<compile_context>
chip_gen: v6e
topology: v6e:2x2x1
jax: 0.10.0
libtpu: 0.0.40
codegen_flags: <defaults>
</compile_context>

<pallas_src>
import functools

import jax
import jax.numpy as jnp
import numpy as np
from jax.experimental import pallas as pl
from jax.experimental.pallas import tpu as pltpu


# ------------------- Fused qkv + attention + projection kernel ---------------
def _fused_attn_proj_kernel(x_ref, wqkv_t_ref, wproj_t_ref, bias_ref, o_ref,
                            *, num_heads, scale):
    # x_ref       : (1, S, dim)   tokens of one batch element
    # wqkv_t_ref  : (dim, 3*dim)  pre-transposed qkv weight (x @ Wqkv^T layout)
    # wproj_t_ref : (dim, dim)    pre-transposed projection weight
    # bias_ref    : (1, dim)
    # o_ref       : (1, S, dim)   projected output (lane-dense final store)
    x = x_ref[0]                                    # (S, dim)
    S, dim = x.shape
    hd = dim // num_heads

    # Single fused QKV projection for all heads (standard MXU orientation).
    qkv = jnp.dot(x, wqkv_t_ref[...],
                  preferred_element_type=jnp.float32)               # (S, 3*dim)

    dn_nt = (((1,), (1,)), ((), ()))                # contract last-last: q @ k^T

    y = jnp.zeros((S, dim), jnp.float32)            # vreg accumulator (no scratch)
    for h in range(num_heads):                      # static unroll, num_heads small
        lo = h * hd
        q = qkv[:, lo:lo + hd] * scale              # (S, hd)
        k = qkv[:, dim + lo:dim + lo + hd]
        v = qkv[:, 2 * dim + lo:2 * dim + lo + hd]

        s = jax.lax.dot_general(q, k, dn_nt,
                                preferred_element_type=jnp.float32)  # (S, S)
        # Numerically-stable softmax (XLU reduces, EUP exp/reciprocal).
        s = s - jnp.max(s, axis=-1, keepdims=True)
        p = jnp.exp(s)
        p = p * pl.reciprocal(jnp.sum(p, axis=-1, keepdims=True), approx=True)

        pv = jnp.dot(p, v, preferred_element_type=jnp.float32)       # (S, hd)
        # Head-concat fused into the output projection: rows [lo, lo+hd) of
        # Wp^T belong to head h.  Static, sublane-aligned Ref slice -> free.
        y = y + jnp.dot(pv, wproj_t_ref[lo:lo + hd, :],
                        preferred_element_type=jnp.float32)          # (S, dim)

    o_ref[0] = (y + bias_ref[...]).astype(o_ref.dtype)


# ----------------------------- Wrapper ---------------------------------------
def causal_mha_forward(x, qkv_weight, proj_weight, proj_bias, num_heads):
    """x: (B, H, W, dim). qkv_weight: (3*dim, dim) [PyTorch Linear layout].
    proj_weight: (dim, dim). proj_bias: (dim,). Returns (B, H, W, dim)."""
    B, H, W, dim = x.shape
    S = H * W
    hd = dim // num_heads
    scale = hd ** (-0.5)

    x_flat = x.reshape(B, S, dim)
    # One-time tiny layout prep outside the kernel so all in-kernel matmuls
    # are standard (M,K)@(K,N).
    wqkv_t = qkv_weight.T                           # (dim, 3*dim)
    wproj_t = proj_weight.T                         # (dim, dim)
    bias2d = proj_bias.reshape(1, dim)

    flops = B * (2 * S * dim * (3 * dim)            # fused qkv projection
                 + num_heads * (2 * S * S * hd      # q @ k^T
                                + 2 * S * S * hd    # p @ v
                                + 2 * S * hd * dim))  # per-head output proj
    transcendentals = B * num_heads * S * S         # exp()
    bytes_accessed = 4 * (x_flat.size + wqkv_t.size + wproj_t.size
                          + proj_bias.size + B * S * dim)
    cost = pl.CostEstimate(flops=int(flops),
                           transcendentals=int(transcendentals),
                           bytes_accessed=int(bytes_accessed))

    out = pl.pallas_call(
        functools.partial(_fused_attn_proj_kernel,
                          num_heads=num_heads, scale=scale),
        out_shape=jax.ShapeDtypeStruct((B, S, dim), x.dtype),
        grid=(B,),
        in_specs=[
            pl.BlockSpec((1, S, dim), lambda b: (b, 0, 0)),
            # Weights/bias: constant block index -> DMA'd once, stay resident.
            pl.BlockSpec((dim, 3 * dim), lambda b: (0, 0)),
            pl.BlockSpec((dim, dim), lambda b: (0, 0)),
            pl.BlockSpec((1, dim), lambda b: (0, 0)),
        ],
        out_specs=pl.BlockSpec((1, S, dim), lambda b: (b, 0, 0)),
        compiler_params=pltpu.CompilerParams(
            dimension_semantics=("parallel",)),
        cost_estimate=cost,
    )(x_flat, wqkv_t, wproj_t, bias2d)

    return out.reshape(B, H, W, dim)


# ----------------------------- Pure-JAX reference -----------------------------
def _reference(x, qkv_weight, proj_weight, proj_bias, num_heads):
    B, H, W, dim = x.shape
    S = H * W
    hd = dim // num_heads
    scale = hd ** (-0.5)
    qkv = x.reshape(B, S, dim) @ qkv_weight.T                       # (B,S,3*dim)
    qkv = qkv.reshape(B, S, 3, num_heads, hd).transpose(2, 0, 3, 1, 4)
    q, k, v = qkv.reshape(3, B * num_heads, S, hd)
    wei = (q * scale) @ jnp.swapaxes(k, -2, -1)
    wei = jax.nn.softmax(wei, axis=-1)
    out = wei @ v
    out = out.reshape(B, num_heads, H, W, hd).transpose(0, 2, 3, 1, 4)
    return out.reshape(B, H, W, dim) @ proj_weight.T + proj_bias


if __name__ == "__main__":
    B, H, W, dim, num_heads = 2, 8, 8, 32, 4

    key = jax.random.PRNGKey(0)
    kx, kqkv, kpw, kpb = jax.random.split(key, 4)
    x = jax.random.normal(kx, (B, H, W, dim), dtype=jnp.float32)
    # nn.Linear(dim, 3*dim, bias=False): weight shape (3*dim, dim)
    qkv_weight = jax.random.normal(kqkv, (3 * dim, dim), dtype=jnp.float32) * 0.05
    # nn.Linear(dim, dim): weight (dim, dim), bias (dim,)
    proj_weight = jax.random.normal(kpw, (dim, dim), dtype=jnp.float32) * 0.05
    proj_bias = jax.random.normal(kpb, (dim,), dtype=jnp.float32) * 0.05

    out = causal_mha_forward(x, qkv_weight, proj_weight, proj_bias, num_heads)
    out = jax.block_until_ready(out)

    ref = _reference(x, qkv_weight, proj_weight, proj_bias, num_heads)
    # Tolerance relaxed vs 1e-4 because the softmax denominator uses the EUP
    # approximate reciprocal (pl.reciprocal(approx=True)).
    np.testing.assert_allclose(np.asarray(out), np.asarray(ref),
                               rtol=2e-3, atol=2e-3)

    print("KERNEL_OK")
</pallas_src>

<mosaic_0001>
module attributes {stable_mosaic.version = 11 : i64} {
  func.func @_fused_attn_proj_kernel(%arg0: i32, %arg1: memref<1x64x32xf32, #tpu.memory_space<vmem>>, %arg2: memref<32x96xf32, #tpu.memory_space<vmem>>, %arg3: memref<32x32xf32, #tpu.memory_space<vmem>>, %arg4: memref<1x32xf32, #tpu.memory_space<vmem>>, %arg5: memref<1x64x32xf32, #tpu.memory_space<vmem>>) attributes {dimension_semantics = [#tpu.dimension_semantics<parallel>], iteration_bounds = array<i64: 2>, scalar_prefetch = 0 : i64, scratch_operands = 0 : i64, tpu.core_type = #tpu.core_type<tc>, window_params = [{transform_indices = @transform_0, window_bounds = array<i64: 1, 64, 32>}, {pipeline_mode = #tpu.pipeline_mode<synchronous>, transform_indices = @transform_1, window_bounds = array<i64: 32, 96>}, {pipeline_mode = #tpu.pipeline_mode<synchronous>, transform_indices = @transform_2, window_bounds = array<i64: 32, 32>}, {pipeline_mode = #tpu.pipeline_mode<synchronous>, transform_indices = @transform_3, window_bounds = array<i64: 1, 32>}, {transform_indices = @transform_4, window_bounds = array<i64: 1, 64, 32>}]} {
    %c0 = arith.constant 0 : index
    %c0_0 = arith.constant 0 : index
    %c0_1 = arith.constant 0 : index
    %0 = vector.load %arg1[%c0, %c0_0, %c0_1] : memref<1x64x32xf32, #tpu.memory_space<vmem>>, vector<1x64x32xf32>
    %1 = vector.shape_cast %0 : vector<1x64x32xf32> to vector<64x32xf32>
    %c0_2 = arith.constant 0 : index
    %c0_3 = arith.constant 0 : index
    %2 = vector.load %arg2[%c0_2, %c0_3] : memref<32x96xf32, #tpu.memory_space<vmem>>, vector<32x96xf32>
    %cst = arith.constant dense<0.000000e+00> : vector<64x96xf32>
    %3 = tpu.matmul %1, %2, %cst {dimension_numbers = #tpu.dot_dimension_numbers<[1], [0], [0], [1], [0, 0, 1, 1], [], []>} : vector<64x32xf32>, vector<32x96xf32>, vector<64x96xf32> -> vector<64x96xf32>
    %cst_4 = arith.constant 0.000000e+00 : f32
    %4 = vector.broadcast %cst_4 : f32 to vector<64x32xf32>
    %5 = vector.extract_strided_slice %3 {offsets = [0, 0], sizes = [64, 8], strides = [1, 1]} : vector<64x96xf32> to vector<64x8xf32>
    %cst_5 = arith.constant 0.353553385 : f32
    %6 = vector.broadcast %cst_5 : f32 to vector<64x8xf32>
    %7 = arith.mulf %5, %6 : vector<64x8xf32>
    %8 = vector.extract_strided_slice %3 {offsets = [0, 32], sizes = [64, 8], strides = [1, 1]} : vector<64x96xf32> to vector<64x8xf32>
    %9 = vector.extract_strided_slice %3 {offsets = [0, 64], sizes = [64, 8], strides = [1, 1]} : vector<64x96xf32> to vector<64x8xf32>
    %cst_6 = arith.constant dense<0.000000e+00> : vector<64x64xf32>
    %10 = tpu.matmul %7, %8, %cst_6 {dimension_numbers = #tpu.dot_dimension_numbers<[1], [1], [0], [0], [0, 0, 1, 0], [], []>} : vector<64x8xf32>, vector<64x8xf32>, vector<64x64xf32> -> vector<64x64xf32>
    %cst_7 = arith.constant dense<0xFF800000> : vector<64xf32>
    %11 = vector.multi_reduction <maximumf>, %10, %cst_7 [1] : vector<64x64xf32> to vector<64xf32>
    %12 = vector.shape_cast %11 : vector<64xf32> to vector<64x1xf32>
    %13 = vector.broadcast %12 : vector<64x1xf32> to vector<64x64xf32>
    %14 = arith.subf %10, %13 : vector<64x64xf32>
    %15 = math.exp %14 : vector<64x64xf32>
    %cst_8 = arith.constant dense<0.000000e+00> : vector<64xf32>
    %16 = vector.multi_reduction <add>, %15, %cst_8 [1] : vector<64x64xf32> to vector<64xf32>
    %17 = vector.shape_cast %16 : vector<64xf32> to vector<64x1xf32>
    %18 = tpu.reciprocal %17 {approx = true} : vector<64x1xf32> -> vector<64x1xf32>
    %19 = vector.broadcast %18 : vector<64x1xf32> to vector<64x64xf32>
    %20 = arith.mulf %15, %19 : vector<64x64xf32>
    %cst_9 = arith.constant dense<0.000000e+00> : vector<64x8xf32>
    %21 = tpu.matmul %20, %9, %cst_9 {dimension_numbers = #tpu.dot_dimension_numbers<[1], [0], [0], [1], [0, 0, 1, 1], [], []>} : vector<64x64xf32>, vector<64x8xf32>, vector<64x8xf32> -> vector<64x8xf32>
    %c0_10 = arith.constant 0 : index
    %c0_11 = arith.constant 0 : index
    %22 = vector.load %arg3[%c0_10, %c0_11] : memref<32x32xf32, #tpu.memory_space<vmem>>, vector<8x32xf32>
    %cst_12 = arith.constant dense<0.000000e+00> : vector<64x32xf32>
    %23 = tpu.matmul %21, %22, %cst_12 {dimension_numbers = #tpu.dot_dimension_numbers<[1], [0], [0], [1], [0, 0, 1, 1], [], []>} : vector<64x8xf32>, vector<8x32xf32>, vector<64x32xf32> -> vector<64x32xf32>
    %24 = arith.addf %4, %23 : vector<64x32xf32>
    %25 = vector.extract_strided_slice %3 {offsets = [0, 8], sizes = [64, 8], strides = [1, 1]} : vector<64x96xf32> to vector<64x8xf32>
    %cst_13 = arith.constant 0.353553385 : f32
    %26 = vector.broadcast %cst_13 : f32 to vector<64x8xf32>
    %27 = arith.mulf %25, %26 : vector<64x8xf32>
    %28 = vector.extract_strided_slice %3 {offsets = [0, 40], sizes = [64, 8], strides = [1, 1]} : vector<64x96xf32> to vector<64x8xf32>
    %29 = vector.extract_strided_slice %3 {offsets = [0, 72], sizes = [64, 8], strides = [1, 1]} : vector<64x96xf32> to vector<64x8xf32>
    %cst_14 = arith.constant dense<0.000000e+00> : vector<64x64xf32>
    %30 = tpu.matmul %27, %28, %cst_14 {dimension_numbers = #tpu.dot_dimension_numbers<[1], [1], [0], [0], [0, 0, 1, 0], [], []>} : vector<64x8xf32>, vector<64x8xf32>, vector<64x64xf32> -> vector<64x64xf32>
    %cst_15 = arith.constant dense<0xFF800000> : vector<64xf32>
    %31 = vector.multi_reduction <maximumf>, %30, %cst_15 [1] : vector<64x64xf32> to vector<64xf32>
    %32 = vector.shape_cast %31 : vector<64xf32> to vector<64x1xf32>
    %33 = vector.broadcast %32 : vector<64x1xf32> to vector<64x64xf32>
    %34 = arith.subf %30, %33 : vector<64x64xf32>
    %35 = math.exp %34 : vector<64x64xf32>
    %cst_16 = arith.constant dense<0.000000e+00> : vector<64xf32>
    %36 = vector.multi_reduction <add>, %35, %cst_16 [1] : vector<64x64xf32> to vector<64xf32>
    %37 = vector.shape_cast %36 : vector<64xf32> to vector<64x1xf32>
    %38 = tpu.reciprocal %37 {approx = true} : vector<64x1xf32> -> vector<64x1xf32>
    %39 = vector.broadcast %38 : vector<64x1xf32> to vector<64x64xf32>
    %40 = arith.mulf %35, %39 : vector<64x64xf32>
    %cst_17 = arith.constant dense<0.000000e+00> : vector<64x8xf32>
    %41 = tpu.matmul %40, %29, %cst_17 {dimension_numbers = #tpu.dot_dimension_numbers<[1], [0], [0], [1], [0, 0, 1, 1], [], []>} : vector<64x64xf32>, vector<64x8xf32>, vector<64x8xf32> -> vector<64x8xf32>
    %c8 = arith.constant 8 : index
    %c0_18 = arith.constant 0 : index
    %42 = vector.load %arg3[%c8, %c0_18] : memref<32x32xf32, #tpu.memory_space<vmem>>, vector<8x32xf32>
    %cst_19 = arith.constant dense<0.000000e+00> : vector<64x32xf32>
    %43 = tpu.matmul %41, %42, %cst_19 {dimension_numbers = #tpu.dot_dimension_numbers<[1], [0], [0], [1], [0, 0, 1, 1], [], []>} : vector<64x8xf32>, vector<8x32xf32>, vector<64x32xf32> -> vector<64x32xf32>
    %44 = arith.addf %24, %43 : vector<64x32xf32>
    %45 = vector.extract_strided_slice %3 {offsets = [0, 16], sizes = [64, 8], strides = [1, 1]} : vector<64x96xf32> to vector<64x8xf32>
    %cst_20 = arith.constant 0.353553385 : f32
    %46 = vector.broadcast %cst_20 : f32 to vector<64x8xf32>
    %47 = arith.mulf %45, %46 : vector<64x8xf32>
    %48 = vector.extract_strided_slice %3 {offsets = [0, 48], sizes = [64, 8], strides = [1, 1]} : vector<64x96xf32> to vector<64x8xf32>
    %49 = vector.extract_strided_slice %3 {offsets = [0, 80], sizes = [64, 8], strides = [1, 1]} : vector<64x96xf32> to vector<64x8xf32>
    %cst_21 = arith.constant dense<0.000000e+00> : vector<64x64xf32>
    %50 = tpu.matmul %47, %48, %cst_21 {dimension_numbers = #tpu.dot_dimension_numbers<[1], [1], [0], [0], [0, 0, 1, 0], [], []>} : vector<64x8xf32>, vector<64x8xf32>, vector<64x64xf32> -> vector<64x64xf32>
    %cst_22 = arith.constant dense<0xFF800000> : vector<64xf32>
    %51 = vector.multi_reduction <maximumf>, %50, %cst_22 [1] : vector<64x64xf32> to vector<64xf32>
    %52 = vector.shape_cast %51 : vector<64xf32> to vector<64x1xf32>
    %53 = vector.broadcast %52 : vector<64x1xf32> to vector<64x64xf32>
    %54 = arith.subf %50, %53 : vector<64x64xf32>
    %55 = math.exp %54 : vector<64x64xf32>
    %cst_23 = arith.constant dense<0.000000e+00> : vector<64xf32>
    %56 = vector.multi_reduction <add>, %55, %cst_23 [1] : vector<64x64xf32> to vector<64xf32>
    %57 = vector.shape_cast %56 : vector<64xf32> to vector<64x1xf32>
    %58 = tpu.reciprocal %57 {approx = true} : vector<64x1xf32> -> vector<64x1xf32>
    %59 = vector.broadcast %58 : vector<64x1xf32> to vector<64x64xf32>
    %60 = arith.mulf %55, %59 : vector<64x64xf32>
    %cst_24 = arith.constant dense<0.000000e+00> : vector<64x8xf32>
    %61 = tpu.matmul %60, %49, %cst_24 {dimension_numbers = #tpu.dot_dimension_numbers<[1], [0], [0], [1], [0, 0, 1, 1], [], []>} : vector<64x64xf32>, vector<64x8xf32>, vector<64x8xf32> -> vector<64x8xf32>
    %c16 = arith.constant 16 : index
    %c0_25 = arith.constant 0 : index
    %62 = vector.load %arg3[%c16, %c0_25] : memref<32x32xf32, #tpu.memory_space<vmem>>, vector<8x32xf32>
    %cst_26 = arith.constant dense<0.000000e+00> : vector<64x32xf32>
    %63 = tpu.matmul %61, %62, %cst_26 {dimension_numbers = #tpu.dot_dimension_numbers<[1], [0], [0], [1], [0, 0, 1, 1], [], []>} : vector<64x8xf32>, vector<8x32xf32>, vector<64x32xf32> -> vector<64x32xf32>
    %64 = arith.addf %44, %63 : vector<64x32xf32>
    %65 = vector.extract_strided_slice %3 {offsets = [0, 24], sizes = [64, 8], strides = [1, 1]} : vector<64x96xf32> to vector<64x8xf32>
    %cst_27 = arith.constant 0.353553385 : f32
    %66 = vector.broadcast %cst_27 : f32 to vector<64x8xf32>
    %67 = arith.mulf %65, %66 : vector<64x8xf32>
    %68 = vector.extract_strided_slice %3 {offsets = [0, 56], sizes = [64, 8], strides = [1, 1]} : vector<64x96xf32> to vector<64x8xf32>
    %69 = vector.extract_strided_slice %3 {offsets = [0, 88], sizes = [64, 8], strides = [1, 1]} : vector<64x96xf32> to vector<64x8xf32>
    %cst_28 = arith.constant dense<0.000000e+00> : vector<64x64xf32>
    %70 = tpu.matmul %67, %68, %cst_28 {dimension_numbers = #tpu.dot_dimension_numbers<[1], [1], [0], [0], [0, 0, 1, 0], [], []>} : vector<64x8xf32>, vector<64x8xf32>, vector<64x64xf32> -> vector<64x64xf32>
    %cst_29 = arith.constant dense<0xFF800000> : vector<64xf32>
    %71 = vector.multi_reduction <maximumf>, %70, %cst_29 [1] : vector<64x64xf32> to vector<64xf32>
    %72 = vector.shape_cast %71 : vector<64xf32> to vector<64x1xf32>
    %73 = vector.broadcast %72 : vector<64x1xf32> to vector<64x64xf32>
    %74 = arith.subf %70, %73 : vector<64x64xf32>
    %75 = math.exp %74 : vector<64x64xf32>
    %cst_30 = arith.constant dense<0.000000e+00> : vector<64xf32>
    %76 = vector.multi_reduction <add>, %75, %cst_30 [1] : vector<64x64xf32> to vector<64xf32>
    %77 = vector.shape_cast %76 : vector<64xf32> to vector<64x1xf32>
    %78 = tpu.reciprocal %77 {approx = true} : vector<64x1xf32> -> vector<64x1xf32>
    %79 = vector.broadcast %78 : vector<64x1xf32> to vector<64x64xf32>
    %80 = arith.mulf %75, %79 : vector<64x64xf32>
    %cst_31 = arith.constant dense<0.000000e+00> : vector<64x8xf32>
    %81 = tpu.matmul %80, %69, %cst_31 {dimension_numbers = #tpu.dot_dimension_numbers<[1], [0], [0], [1], [0, 0, 1, 1], [], []>} : vector<64x64xf32>, vector<64x8xf32>, vector<64x8xf32> -> vector<64x8xf32>
    %c24 = arith.constant 24 : index
    %c0_32 = arith.constant 0 : index
    %82 = vector.load %arg3[%c24, %c0_32] : memref<32x32xf32, #tpu.memory_space<vmem>>, vector<8x32xf32>
    %cst_33 = arith.constant dense<0.000000e+00> : vector<64x32xf32>
    %83 = tpu.matmul %81, %82, %cst_33 {dimension_numbers = #tpu.dot_dimension_numbers<[1], [0], [0], [1], [0, 0, 1, 1], [], []>} : vector<64x8xf32>, vector<8x32xf32>, vector<64x32xf32> -> vector<64x32xf32>
    %84 = arith.addf %64, %83 : vector<64x32xf32>
    %c0_34 = arith.constant 0 : index
    %c0_35 = arith.constant 0 : index
    %85 = vector.load %arg4[%c0_34, %c0_35] : memref<1x32xf32, #tpu.memory_space<vmem>>, vector<1x32xf32>
    %86 = vector.broadcast %85 : vector<1x32xf32> to vector<64x32xf32>
    %87 = arith.addf %84, %86 : vector<64x32xf32>
    %c0_36 = arith.constant 0 : index
    %c0_37 = arith.constant 0 : index
    %c0_38 = arith.constant 0 : index
    %88 = vector.load %arg5[%c0_36, %c0_37, %c0_38] : memref<1x64x32xf32, #tpu.memory_space<vmem>>, vector<1x64x32xf32>
    %89 = vector.shape_cast %88 : vector<1x64x32xf32> to vector<64x32xf32>
    %90 = vector.shape_cast %87 : vector<64x32xf32> to vector<1x64x32xf32>
    tpu.vector_store %arg5[%c0_36, %c0_37, %c0_38], %90 {strides = array<i32>} : memref<1x64x32xf32, #tpu.memory_space<vmem>>, vector<1x64x32xf32>,
    return
  }
  func.func @transform_0(%arg0: i32) -> (i32, i32, i32) {
    %c0_i32 = arith.constant 0 : i32
    %c0_i32_0 = arith.constant 0 : i32
    %c0_i32_1 = arith.constant 0 : i32
    return %arg0, %c0_i32, %c0_i32_0 : i32, i32, i32
  }
  func.func @transform_1(%arg0: i32) -> (i32, i32) {
    %c0_i32 = arith.constant 0 : i32
    %c0_i32_0 = arith.constant 0 : i32
    %c0_i32_1 = arith.constant 0 : i32
    return %c0_i32, %c0_i32_0 : i32, i32
  }
  func.func @transform_2(%arg0: i32) -> (i32, i32) {
    %c0_i32 = arith.constant 0 : i32
    %c0_i32_0 = arith.constant 0 : i32
    %c0_i32_1 = arith.constant 0 : i32
    return %c0_i32, %c0_i32_0 : i32, i32
  }
  func.func @transform_3(%arg0: i32) -> (i32, i32) {
    %c0_i32 = arith.constant 0 : i32
    %c0_i32_0 = arith.constant 0 : i32
    %c0_i32_1 = arith.constant 0 : i32
    return %c0_i32, %c0_i32_0 : i32, i32
  }
  func.func @transform_4(%arg0: i32) -> (i32, i32, i32) {
    %c0_i32 = arith.constant 0 : i32
    %c0_i32_0 = arith.constant 0 : i32
    %c0_i32_1 = arith.constant 0 : i32
    return %arg0, %c0_i32, %c0_i32_0 : i32, i32, i32
  }
}

</mosaic_0001>

<llo_original>
// kernel: tpu_custom_call.1
$region0: #{tpu_custom_call.1}
  #allocation0 [shape = 'u32[]', space=smem, size = 0x4, offset = 0x4, fixed_abs, tag = 'smem constant byte address 0x4 - core index']
  #allocation1 [shape = 'u32[144,128]{1,0:T(1,128)}', space=vmem, size = 0x12000, scoped, tag = 'internal scratch']
  %s0 = inlined_call_operand.vmem [shape: f32[2,64,32], index: 0, kind: input, shape index: {}]
  %s1 = inlined_call_operand.vmem [shape: f32[32,96], index: 1, kind: input, shape index: {}]
  %s2 = inlined_call_operand.vmem [shape: f32[32,32], index: 2, kind: input, shape index: {}]
  %s3 = inlined_call_operand.vmem [shape: f32[1,32], index: 3, kind: input, shape index: {}]
  %s4 = inlined_call_operand.vmem [shape: f32[2,64,32], index: 4, kind: output, shape index: {}]
  %s5 = sld [smem:[#allocation0]]
  $region49: #{tpu_custom_call.1} parent=0
    _
  %s7 = ssub.s32 1, %s5
  %s8 = scalar_select 0, %s7, %s5
  loop: start=0, step=1, limit=4
  $region2: #{tpu_custom_call.1} parent=0 // loop_pre_header
    _
  $region3: #{tpu_custom_call.1} parent=0 // loop_header
    %s10 = sphi 0, %s14
    %p11 = scmp.ge.s32.totalorder %s10, 4
    %s20 = sphi 0, %s22
    %s23 = sphi 0, %s20
    %s24 = sphi 0, %s23
    %s40 = sphi 0, %s24
    %s44 = sphi 0, %s44
    %s46 = sphi 0, %s44
    %s47 = sphi 0, %s46
    %s61 = sphi 0, %s47
    %s65 = sphi 0, %s65
    %s67 = sphi 0, %s65
    %s68 = sphi 0, %s67
    %s82 = sphi 0, %s68
    %s86 = sphi 0, %s86
    %s88 = sphi 0, %s86
    %s89 = sphi 0, %s88
    %s103 = sphi 0, %s89
    %s109 = sphi 0, %s111
    %s112 = sphi 0, %s109
    %s113 = sphi 0, %s112
    %s129 = sphi 0, %s113
  $region4: #{tpu_custom_call.1} parent=0 // loop_header_branch
    %13 = sbr.rel (%p11) target = $region8
  $region5: #{tpu_custom_call.1} parent=0 // loop_body
    %s15 = ssub.s32 %s10, 1
    %s16 = ssub.s32 %s10, 2
    %s17 = sadd.s32 %s10, 1
    %s18 = ssub.s32 %s10, %s17
    %p19 = scmp.eq.s32.totalorder %s18, 0
    %s21 = sadd.s32 %s20, 1
    %s22 = scalar_select %p19, %s20, %s21
    %p25 = pneg %p19
    %p26 = scmp.eq.s32.totalorder %s10, 1
    %p27 = por %p25, %p26
    %p28 = scmp.ne.s32.totalorder %s20, %s23
    %p29 = scmp.eq.s32.totalorder %s10, 0
    %p30 = por %p28, %p29
    %p31 = scmp.ne.s32.totalorder %s20, %s23
    %p32 = scmp.eq.s32.totalorder %s15, 1
    %p33 = por %p31, %p32
    %p34 = scmp.ne.s32.totalorder %s23, %s24
    %p35 = scmp.eq.s32.totalorder %s15, 0
    %p36 = por %p34, %p35
    %p37 = scmp.ne.s32.totalorder %s23, %s24
    %p38 = scmp.eq.s32.totalorder %s16, 1
    %p39 = por %p37, %p38
    %p41 = scmp.ne.s32.totalorder %s24, %s40
    %p42 = scmp.eq.s32.totalorder %s16, 0
    %p43 = por %p41, %p42
    %s45 = sadd.s32 %s44, 1
    %p48 = scmp.eq.s32.totalorder %s10, 1
    %p49 = scmp.ne.s32.totalorder %s44, %s46
    %p50 = scmp.eq.s32.totalorder %s10, 0
    %p51 = por %p49, %p50
    %p52 = scmp.ne.s32.totalorder %s44, %s46
    %p53 = scmp.eq.s32.totalorder %s15, 1
    %p54 = por %p52, %p53
    %p55 = scmp.ne.s32.totalorder %s46, %s47
    %p56 = scmp.eq.s32.totalorder %s15, 0
    %p57 = por %p55, %p56
    %p58 = scmp.ne.s32.totalorder %s46, %s47
    %p59 = scmp.eq.s32.totalorder %s16, 1
    %p60 = por %p58, %p59
    %p62 = scmp.ne.s32.totalorder %s47, %s61
    %p63 = scmp.eq.s32.totalorder %s16, 0
    %p64 = por %p62, %p63
    %s66 = sadd.s32 %s65, 1
    %p69 = scmp.eq.s32.totalorder %s10, 1
    %p70 = scmp.ne.s32.totalorder %s65, %s67
    %p71 = scmp.eq.s32.totalorder %s10, 0
    %p72 = por %p70, %p71
    %p73 = scmp.ne.s32.totalorder %s65, %s67
    %p74 = scmp.eq.s32.totalorder %s15, 1
    %p75 = por %p73, %p74
    %p76 = scmp.ne.s32.totalorder %s67, %s68
    %p77 = scmp.eq.s32.totalorder %s15, 0
    %p78 = por %p76, %p77
    %p79 = scmp.ne.s32.totalorder %s67, %s68
    %p80 = scmp.eq.s32.totalorder %s16, 1
    %p81 = por %p79, %p80
    %p83 = scmp.ne.s32.totalorder %s68, %s82
    %p84 = scmp.eq.s32.totalorder %s16, 0
    %p85 = por %p83, %p84
    %s87 = sadd.s32 %s86, 1
    %p90 = scmp.eq.s32.totalorder %s10, 1
    %p91 = scmp.ne.s32.totalorder %s86, %s88
    %p92 = scmp.eq.s32.totalorder %s10, 0
    %p93 = por %p91, %p92
    %p94 = scmp.ne.s32.totalorder %s86, %s88
    %p95 = scmp.eq.s32.totalorder %s15, 1
    %p96 = por %p94, %p95
    %p97 = scmp.ne.s32.totalorder %s88, %s89
    %p98 = scmp.eq.s32.totalorder %s15, 0
    %p99 = por %p97, %p98
    %p100 = scmp.ne.s32.totalorder %s88, %s89
    %p101 = scmp.eq.s32.totalorder %s16, 1
    %p102 = por %p100, %p101
    %p104 = scmp.ne.s32.totalorder %s89, %s103
    %p105 = scmp.eq.s32.totalorder %s16, 0
    %p106 = por %p104, %p105
    %s107 = ssub.s32 %s10, %s17
    %p108 = scmp.eq.s32.totalorder %s107, 0
    %s110 = sadd.s32 %s109, 1
    %s111 = scalar_select %p108, %s109, %s110
    %p114 = pneg %p108
    %p115 = scmp.eq.s32.totalorder %s10, 1
    %p116 = por %p114, %p115
    %p117 = scmp.ne.s32.totalorder %s109, %s112
    %p118 = scmp.eq.s32.totalorder %s10, 0
    %p119 = por %p117, %p118
    %p120 = scmp.ne.s32.totalorder %s109, %s112
    %p121 = scmp.eq.s32.totalorder %s15, 1
    %p122 = por %p120, %p121
    %p123 = scmp.ne.s32.totalorder %s112, %s113
    %p124 = scmp.eq.s32.totalorder %s15, 0
    %p125 = por %p123, %p124
    %p126 = scmp.ne.s32.totalorder %s112, %s113
    %p127 = scmp.eq.s32.totalorder %s16, 1
    %p128 = por %p126, %p127
    %p130 = scmp.ne.s32.totalorder %s113, %s129
    %p131 = scmp.eq.s32.totalorder %s16, 0
    %p132 = por %p130, %p131
    %p133 = scmp.le.s32.totalorder 1, %s10
    %p134 = scmp.lt.s32.totalorder %s10, 3
    %p135 = pnand %p133, %p134
    %p136 = pneg %p135
    // Predicated region
    $region9: #{tpu_custom_call.1} parent=5 // pred_check
      _
    $region10: #{tpu_custom_call.1} parent=5 // pred_check_branch
      %138 = sbr.rel (%p135) target = $region12
    $region11: #{tpu_custom_call.1} parent=5 // pred_region
      %s139 = ssub.s32 %s10, 1
      // Predicated region
      $region13: #{tpu_custom_call.1} parent=11 // pred_check
        %p140 = pneg %p57
      $region14: #{tpu_custom_call.1} parent=11 // pred_check_branch
        %142 = sbr.rel (%p140) target = $region16
      $region15: #{tpu_custom_call.1} parent=11 // pred_region
        _
      $region16: #{tpu_custom_call.1} parent=11 // pred_fallthru
        _
      // Predicated region
      $region17: #{tpu_custom_call.1} parent=11 // pred_check
        %p143 = pneg %p78
      $region18: #{tpu_custom_call.1} parent=11 // pred_check_branch
        %145 = sbr.rel (%p143) target = $region20
      $region19: #{tpu_custom_call.1} parent=11 // pred_region
        _
      $region20: #{tpu_custom_call.1} parent=11 // pred_fallthru
        _
      // Predicated region
      $region21: #{tpu_custom_call.1} parent=11 // pred_check
        %p146 = pneg %p99
      $region22: #{tpu_custom_call.1} parent=11 // pred_check_branch
        %148 = sbr.rel (%p146) target = $region24
      $region23: #{tpu_custom_call.1} parent=11 // pred_region
        _
      $region24: #{tpu_custom_call.1} parent=11 // pred_fallthru
        _
    $region12: #{tpu_custom_call.1} parent=5 // pred_fallthru
      _
    %p149 = scmp.lt.s32.totalorder %s10, 2
    // Predicated region
    $region25: #{tpu_custom_call.1} parent=5 // pred_check
      %p150 = pneg %p149
    $region26: #{tpu_custom_call.1} parent=5 // pred_check_branch
      %152 = sbr.rel (%p150) target = $region28
    $region27: #{tpu_custom_call.1} parent=5 // pred_region
      // Predicated region
      $region29: #{tpu_custom_call.1} parent=27 // pred_check
        %p153 = pneg %p30
      $region30: #{tpu_custom_call.1} parent=27 // pred_check_branch
        %155 = sbr.rel (%p153) target = $region32
      $region31: #{tpu_custom_call.1} parent=27 // pred_region
        %p156 = scmp.lt.s32.totalorder %s10, 1
        %s157 = scalar_select %p156, %s10, 1
        %s158 = smul.addr %s157, 8
        %s159 = smul.addr %s158, 8
        %s160 = scalar_lea.vmem %s0, %s159
      $region32: #{tpu_custom_call.1} parent=27 // pred_fallthru
        _
    $region28: #{tpu_custom_call.1} parent=5 // pred_fallthru
      _
    %p161 = scmp.le.s32.totalorder 1, %s10
    %p162 = scmp.lt.s32.totalorder %s10, 3
    %p163 = pnand %p161, %p162
    %p164 = pneg %p163
    // Predicated region
    $region33: #{tpu_custom_call.1} parent=5 // pred_check
      _
    $region34: #{tpu_custom_call.1} parent=5 // pred_check_branch
      %166 = sbr.rel (%p163) target = $region36
    $region35: #{tpu_custom_call.1} parent=5 // pred_region
      %s167 = ssub.s32 %s10, 1
      %p168 = scmp.lt.s32.totalorder %s15, 1
      %s169 = scalar_select %p168, %s15, 1
      %s170 = smul.addr %s169, 8
      %s171 = smul.addr %s170, 8
      %s172 = scalar_lea.vmem %s0, %s171
      %p173 = pneg %p36
      %p174 = pneg %p33
      %p175 = pneg %p57
      %p176 = pneg %p54
      %p177 = pneg %p78
      %p178 = pneg %p75
      %p179 = pneg %p99
      %p180 = pneg %p96
      %p181 = pneg %p125
      %p182 = pneg %p122
      %p183 = scmp.lt.s32.totalorder %s15, 1
      %s184 = scalar_select %p183, %s15, 1
      %s185 = smul.addr %s184, 8
      %s186 = smul.addr %s185, 8
      %s187 = scalar_lea.vmem %s4, %s186
      %p188 = scmp.lt.s32.totalorder %s15, 1
      %s189 = scalar_select %p188, %s15, 1
      %s190 = smul.addr %s189, 8
      %s191 = smul.addr %s190, 8
      %s192 = scalar_lea.vmem %s0, %s191
      %p193 = scmp.lt.s32.totalorder %s15, 1
      %s194 = scalar_select %p193, %s15, 1
      %s195 = smul.addr %s194, 8
      %s196 = smul.addr %s195, 8
      %s197 = scalar_lea.vmem %s4, %s196
      %v198 = vld [vmem:[%s192] sm:$0xff]
      %v199 = vld [vmem:[%s192 + $0x8] sm:$0xff]
      %v200 = vld [vmem:[%s192 + $0x10] sm:$0xff]
      %v201 = vld [vmem:[%s192 + $0x18] sm:$0xff]
      %v202 = vld [vmem:[%s192 + $0x20] sm:$0xff]
      %v203 = vld [vmem:[%s192 + $0x28] sm:$0xff]
      %v204 = vld [vmem:[%s192 + $0x30] sm:$0xff]
      %v205 = vld [vmem:[%s192 + $0x38] sm:$0xff]
      %v206 = vld [vmem:[%s1] sm:$0xff]
      %v207 = vld [vmem:[%s1 + $0x8] sm:$0xff]
      %v208 = vld [vmem:[%s1 + $0x10] sm:$0xff]
      %v209 = vld [vmem:[%s1 + $0x18] sm:$0xff]
      %vm210 = vcmask 261120
      %v212 = vsel %vm210, %v198, 0
      %v215 = vsel %vm210, %v199, 0
      %v218 = vsel %vm210, %v200, 0
      %v221 = vsel %vm210, %v201, 0
      %v224 = vsel %vm210, %v202, 0
      %v227 = vsel %vm210, %v203, 0
      %v230 = vsel %vm210, %v204, 0
      %v233 = vsel %vm210, %v205, 0
      %235 = vmatprep.subr.mxu0 0.0
      %236 = vmatpush1.msra.mxu0 0.0
      %237 = vmatprep.subr.mxu0 0.0
      %238 = vmatpush1.msra.mxu0 0.0
      %239 = vmatprep.subr.mxu0 0.0
      %240 = vmatpush1.msra.mxu0 0.0
      %241 = vmatprep.subr.mxu0 0.0
      %242 = vmatpush1.msra.mxu0 0.0
      %243 = vmatprep.subr.mxu0 0.0
      %244 = vmatpush1.msra.mxu0 0.0
      %245 = vmatprep.subr.mxu0 0.0
      %246 = vmatpush1.msra.mxu0 0.0
      %247 = vmatprep.subr.mxu0 0.0
      %248 = vmatpush1.msra.mxu0 0.0
      %249 = vmatprep.subr.mxu0 0.0
      %250 = vmatpush1.msra.mxu0 0.0
      %251 = vmatprep.subr.mxu0 0.0
      %252 = vmatpush1.msra.mxu0 0.0
      %253 = vmatprep.subr.mxu0 0.0
      %254 = vmatpush1.msra.mxu0 0.0
      %255 = vmatprep.subr.mxu0 0.0
      %256 = vmatpush1.msra.mxu0 0.0
      %257 = vmatprep.subr.mxu0 0.0
      %258 = vmatpush1.msra.mxu0 0.0
      %259 = vmatprep.subr.mxu0 0.0
      %260 = vmatpush1.msra.mxu0 %v209
      %261 = vmatprep.subr.mxu0 0.0
      %262 = vmatpush1.msra.mxu0 %v208
      %263 = vmatprep.subr.mxu0 0.0
      %264 = vmatpush1.msra.mxu0 %v207
      %265 = vmatprep.subr.mxu0 0.0
      %266 = vmatpush1.msra.mxu0 %v206
      %267 = vmatprep.subr.mxu0 0.0
      %268 = vmatpush2.msra.mxu0 0.0
      %269 = vmatprep.subr.mxu0 0.0
      %270 = vmatpush2.msra.mxu0 0.0
      %271 = vmatprep.subr.mxu0 0.0
      %272 = vmatpush2.msra.mxu0 0.0
      %273 = vmatprep.subr.mxu0 0.0
      %274 = vmatpush2.msra.mxu0 0.0
      %275 = vmatprep.subr.mxu0 0.0
      %276 = vmatpush2.msra.mxu0 0.0
      %277 = vmatprep.subr.mxu0 0.0
      %278 = vmatpush2.msra.mxu0 0.0
      %279 = vmatprep.subr.mxu0 0.0
      %280 = vmatpush2.msra.mxu0 0.0
      %281 = vmatprep.subr.mxu0 0.0
      %282 = vmatpush2.msra.mxu0 0.0
      %283 = vmatprep.subr.mxu0 0.0
      %284 = vmatpush2.msra.mxu0 0.0
      %285 = vmatprep.subr.mxu0 0.0
      %286 = vmatpush2.msra.mxu0 0.0
      %287 = vmatprep.subr.mxu0 0.0
      %288 = vmatpush2.msra.mxu0 0.0
      %289 = vmatprep.subr.mxu0 0.0
      %290 = vmatpush2.msra.mxu0 0.0
      %291 = vmatprep.subr.mxu0 0.0
      %292 = vmatpush2.msra.mxu0 0.0
      %293 = vmatprep.subr.mxu0 0.0
      %294 = vmatpush2.msra.mxu0 0.0
      %295 = vmatprep.subr.mxu0 0.0
      %296 = vmatpush2.msra.mxu0 0.0
      %297 = vmatprep.subr.mxu0 0.0
      %298 = vmatpush2.msra.mxu0 0.0
      %299 = vmatprep.mubr.f32.mxu0 0.0
      %300 = vmatmul.mubr.f32.gmra.mxu0 %v212
      %v301 = vpop.f32.mrf.mxu0
      %v302 = vadd.f32 0.0, %v301
      %v303 = vpop.f32.mrf.mxu0
      %304 = vmatprep.mubr.f32.mxu0 0.0
      %305 = vmatmul.mubr.f32.gmra.mxu0 %v215
      %v306 = vpop.f32.mrf.mxu0
      %v307 = vadd.f32 0.0, %v306
      %v308 = vpop.f32.mrf.mxu0
      %309 = vmatprep.mubr.f32.mxu0 0.0
      %310 = vmatmul.mubr.f32.gmra.mxu0 %v218
      %v311 = vpop.f32.mrf.mxu0
      %v312 = vadd.f32 0.0, %v311
      %v313 = vpop.f32.mrf.mxu0
      %314 = vmatprep.mubr.f32.mxu0 0.0
      %315 = vmatmul.mubr.f32.gmra.mxu0 %v221
      %v316 = vpop.f32.mrf.mxu0
      %v317 = vadd.f32 0.0, %v316
      %v318 = vpop.f32.mrf.mxu0
      %319 = vmatprep.mubr.f32.mxu0 0.0
      %320 = vmatmul.mubr.f32.gmra.mxu0 %v224
      %v321 = vpop.f32.mrf.mxu0
      %v322 = vadd.f32 0.0, %v321
      %v323 = vpop.f32.mrf.mxu0
      %324 = vmatprep.mubr.f32.mxu0 0.0
      %325 = vmatmul.mubr.f32.gmra.mxu0 %v227
      %v326 = vpop.f32.mrf.mxu0
      %v327 = vadd.f32 0.0, %v326
      %v328 = vpop.f32.mrf.mxu0
      %329 = vmatprep.mubr.f32.mxu0 0.0
      %330 = vmatmul.mubr.f32.gmra.mxu0 %v230
      %v331 = vpop.f32.mrf.mxu0
      %v332 = vadd.f32 0.0, %v331
      %v333 = vpop.f32.mrf.mxu0
      %334 = vmatprep.mubr.f32.mxu0 0.0
      %335 = vmatmul.mubr.f32.gmra.mxu0 %v233
      %v336 = vpop.f32.mrf.mxu0
      %v337 = vadd.f32 0.0, %v336
      %v338 = vpop.f32.mrf.mxu0
      %339 = vdwg.mxu0
      %v340 = vmul.f32 %v302, 0.35355338
      %v341 = vmul.f32 %v307, 0.35355338
      %v342 = vmul.f32 %v312, 0.35355338
      %v343 = vmul.f32 %v317, 0.35355338
      %v344 = vmul.f32 %v322, 0.35355338
      %v345 = vmul.f32 %v327, 0.35355338
      %v346 = vmul.f32 %v332, 0.35355338
      %v347 = vmul.f32 %v337, 0.35355338
      %356 = vrot.lane.b32.xlu0 %v302, 96
      %v357 = vpop.permute.xlu0 %356
      %358 = vrot.lane.b32.xlu0 %v307, 96
      %v359 = vpop.permute.xlu0 %358
      %360 = vrot.lane.b32.xlu0 %v312, 96
      %v361 = vpop.permute.xlu0 %360
      %362 = vrot.lane.b32.xlu0 %v317, 96
      %v363 = vpop.permute.xlu0 %362
      %364 = vrot.lane.b32.xlu0 %v322, 96
      %v365 = vpop.permute.xlu0 %364
      %366 = vrot.lane.b32.xlu0 %v327, 96
      %v367 = vpop.permute.xlu0 %366
      %368 = vrot.lane.b32.xlu0 %v332, 96
      %v369 = vpop.permute.xlu0 %368
      %370 = vrot.lane.b32.xlu0 %v337, 96
      %v371 = vpop.permute.xlu0 %370
      %vm372 = vcmask 64512
      %v374 = vsel %vm372, %v340, 0
      %v377 = vsel %vm372, %v341, 0
      %v380 = vsel %vm372, %v342, 0
      %v383 = vsel %vm372, %v343, 0
      %v386 = vsel %vm372, %v344, 0
      %v389 = vsel %vm372, %v345, 0
      %v392 = vsel %vm372, %v346, 0
      %v395 = vsel %vm372, %v347, 0
      %v397 = vsel %vm372, %v357, 0
      %v399 = vsel %vm372, %v359, 0
      %v401 = vsel %vm372, %v361, 0
      %v403 = vsel %vm372, %v363, 0
      %v405 = vsel %vm372, %v365, 0
      %v407 = vsel %vm372, %v367, 0
      %v409 = vsel %vm372, %v369, 0
      %v411 = vsel %vm372, %v371, 0
      %413 = vmatprep.subr.mxu0 0.0
      %414 = vmatpush1.xpose.msra.mxu0 0.0
      %415 = vmatprep.subr.mxu0 0.0
      %416 = vmatpush1.xpose.msra.mxu0 0.0
      %417 = vmatprep.subr.mxu0 0.0
      %418 = vmatpush1.xpose.msra.mxu0 0.0
      %419 = vmatprep.subr.mxu0 0.0
      %420 = vmatpush1.xpose.msra.mxu0 0.0
      %421 = vmatprep.subr.mxu0 0.0
      %422 = vmatpush1.xpose.msra.mxu0 0.0
      %423 = vmatprep.subr.mxu0 0.0
      %424 = vmatpush1.xpose.msra.mxu0 0.0
      %425 = vmatprep.subr.mxu0 0.0
      %426 = vmatpush1.xpose.msra.mxu0 0.0
      %427 = vmatprep.subr.mxu0 0.0
      %428 = vmatpush1.xpose.msra.mxu0 0.0
      %429 = vmatprep.subr.mxu0 0.0
      %430 = vmatpush1.xpose.msra.mxu0 %v411
      %431 = vmatprep.subr.mxu0 0.0
      %432 = vmatpush1.xpose.msra.mxu0 %v409
      %433 = vmatprep.subr.mxu0 0.0
      %434 = vmatpush1.xpose.msra.mxu0 %v407
      %435 = vmatprep.subr.mxu0 0.0
      %436 = vmatpush1.xpose.msra.mxu0 %v405
      %437 = vmatprep.subr.mxu0 0.0
      %438 = vmatpush1.xpose.msra.mxu0 %v403
      %439 = vmatprep.subr.mxu0 0.0
      %440 = vmatpush1.xpose.msra.mxu0 %v401
      %441 = vmatprep.subr.mxu0 0.0
      %442 = vmatpush1.xpose.msra.mxu0 %v399
      %443 = vmatprep.subr.mxu0 0.0
      %444 = vmatpush1.xpose.msra.mxu0 %v397
      %445 = vmatprep.subr.mxu0 0.0
      %446 = vmatpush2.xpose.msra.mxu0 0.0
      %447 = vmatprep.subr.mxu0 0.0
      %448 = vmatpush2.xpose.msra.mxu0 0.0
      %449 = vmatprep.subr.mxu0 0.0
      %450 = vmatpush2.xpose.msra.mxu0 0.0
      %451 = vmatprep.subr.mxu0 0.0
      %452 = vmatpush2.xpose.msra.mxu0 0.0
      %453 = vmatprep.subr.mxu0 0.0
      %454 = vmatpush2.xpose.msra.mxu0 0.0
      %455 = vmatprep.subr.mxu0 0.0
      %456 = vmatpush2.xpose.msra.mxu0 0.0
      %457 = vmatprep.subr.mxu0 0.0
      %458 = vmatpush2.xpose.msra.mxu0 0.0
      %459 = vmatprep.subr.mxu0 0.0
      %460 = vmatpush2.xpose.msra.mxu0 0.0
      %461 = vmatprep.subr.mxu0 0.0
      %462 = vmatpush2.xpose.msra.mxu0 0.0
      %463 = vmatprep.subr.mxu0 0.0
      %464 = vmatpush2.xpose.msra.mxu0 0.0
      %465 = vmatprep.subr.mxu0 0.0
      %466 = vmatpush2.xpose.msra.mxu0 0.0
      %467 = vmatprep.subr.mxu0 0.0
      %468 = vmatpush2.xpose.msra.mxu0 0.0
      %469 = vmatprep.subr.mxu0 0.0
      %470 = vmatpush2.xpose.msra.mxu0 0.0
      %471 = vmatprep.subr.mxu0 0.0
      %472 = vmatpush2.xpose.msra.mxu0 0.0
      %473 = vmatprep.subr.mxu0 0.0
      %474 = vmatpush2.xpose.msra.mxu0 0.0
      %475 = vmatprep.subr.mxu0 0.0
      %476 = vmatpush2.xpose.msra.mxu0 0.0
      %477 = vmatprep.mubr.f32.mxu0 0.0
      %478 = vmatmul.mubr.f32.gmra.mxu0 %v374
      %v479 = vpop.f32.mrf.mxu0
      %v480 = vadd.f32 0.0, %v479
      %v481 = vpop.f32.mrf.mxu0
      %482 = vmatprep.mubr.f32.mxu0 0.0
      %483 = vmatmul.mubr.f32.gmra.mxu0 %v377
      %v484 = vpop.f32.mrf.mxu0
      %v485 = vadd.f32 0.0, %v484
      %v486 = vpop.f32.mrf.mxu0
      %487 = vmatprep.mubr.f32.mxu0 0.0
      %488 = vmatmul.mubr.f32.gmra.mxu0 %v380
      %v489 = vpop.f32.mrf.mxu0
      %v490 = vadd.f32 0.0, %v489
      %v491 = vpop.f32.mrf.mxu0
      %492 = vmatprep.mubr.f32.mxu0 0.0
      %493 = vmatmul.mubr.f32.gmra.mxu0 %v383
      %v494 = vpop.f32.mrf.mxu0
      %v495 = vadd.f32 0.0, %v494
      %v496 = vpop.f32.mrf.mxu0
      %497 = vmatprep.mubr.f32.mxu0 0.0
      %498 = vmatmul.mubr.f32.gmra.mxu0 %v386
      %v499 = vpop.f32.mrf.mxu0
      %v500 = vadd.f32 0.0, %v499
      %v501 = vpop.f32.mrf.mxu0
      %502 = vmatprep.mubr.f32.mxu0 0.0
      %503 = vmatmul.mubr.f32.gmra.mxu0 %v389
      %v504 = vpop.f32.mrf.mxu0
      %v505 = vadd.f32 0.0, %v504
      %v506 = vpop.f32.mrf.mxu0
      %507 = vmatprep.mubr.f32.mxu0 0.0
      %508 = vmatmul.mubr.f32.gmra.mxu0 %v392
      %v509 = vpop.f32.mrf.mxu0
      %v510 = vadd.f32 0.0, %v509
      %v511 = vpop.f32.mrf.mxu0
      %512 = vmatprep.mubr.f32.mxu0 0.0
      %513 = vmatmul.mubr.f32.gmra.mxu0 %v395
      %v514 = vpop.f32.mrf.mxu0
      %v515 = vadd.f32 0.0, %v514
      %v516 = vpop.f32.mrf.mxu0
      %517 = vdwg.mxu0
      %vm518 = vcmask 523264
      %v519 = vsel %vm518, %v480, -inf
      %520 = vmax.xlane.f32.xlu0 %v519
      %v521 = vpop.xlane.xlu0 %520
      %v522 = vsel %vm518, %v485, -inf
      %523 = vmax.xlane.f32.xlu0 %v522
      %v524 = vpop.xlane.xlu0 %523
      %v525 = vsel %vm518, %v490, -inf
      %526 = vmax.xlane.f32.xlu0 %v525
      %v527 = vpop.xlane.xlu0 %526
      %v528 = vsel %vm518, %v495, -inf
      %529 = vmax.xlane.f32.xlu0 %v528
      %v530 = vpop.xlane.xlu0 %529
      %v531 = vsel %vm518, %v500, -inf
      %532 = vmax.xlane.f32.xlu0 %v531
      %v533 = vpop.xlane.xlu0 %532
      %v534 = vsel %vm518, %v505, -inf
      %535 = vmax.xlane.f32.xlu0 %v534
      %v536 = vpop.xlane.xlu0 %535
      %v537 = vsel %vm518, %v510, -inf
      %538 = vmax.xlane.f32.xlu0 %v537
      %v539 = vpop.xlane.xlu0 %538
      %v540 = vsel %vm518, %v515, -inf
      %541 = vmax.xlane.f32.xlu0 %v540
      %v542 = vpop.xlane.xlu0 %541
      %v543 = vsub.f32 %v480, %v521
      %v544 = vsub.f32 %v485, %v524
      %v545 = vsub.f32 %v490, %v527
      %v546 = vsub.f32 %v495, %v530
      %v547 = vsub.f32 %v500, %v533
      %v548 = vsub.f32 %v505, %v536
      %v549 = vsub.f32 %v510, %v539
      %v550 = vsub.f32 %v515, %v542
      %v551 = vmul.f32 %v543, 1.442695
      %v552 = vpow.pop %v551
      %v553 = vmul.f32 %v544, 1.442695
      %v554 = vpow.pop %v553
      %v555 = vmul.f32 %v545, 1.442695
      %v556 = vpow.pop %v555
      %v557 = vmul.f32 %v546, 1.442695
      %v558 = vpow.pop %v557
      %v559 = vmul.f32 %v547, 1.442695
      %v560 = vpow.pop %v559
      %v561 = vmul.f32 %v548, 1.442695
      %v562 = vpow.pop %v561
      %v563 = vmul.f32 %v549, 1.442695
      %v564 = vpow.pop %v563
      %v565 = vmul.f32 %v550, 1.442695
      %v566 = vpow.pop %v565
      %v567 = vsel %vm518, %v552, 0.0
      %568 = vadd.xlane.f32.xlu0 %v567
      %v569 = vpop.xlane.xlu0 %568
      %v570 = vsel %vm518, %v554, 0.0
      %571 = vadd.xlane.f32.xlu0 %v570
      %v572 = vpop.xlane.xlu0 %571
      %v573 = vsel %vm518, %v556, 0.0
      %574 = vadd.xlane.f32.xlu0 %v573
      %v575 = vpop.xlane.xlu0 %574
      %v576 = vsel %vm518, %v558, 0.0
      %577 = vadd.xlane.f32.xlu0 %v576
      %v578 = vpop.xlane.xlu0 %577
      %v579 = vsel %vm518, %v560, 0.0
      %580 = vadd.xlane.f32.xlu0 %v579
      %v581 = vpop.xlane.xlu0 %580
      %v582 = vsel %vm518, %v562, 0.0
      %583 = vadd.xlane.f32.xlu0 %v582
      %v584 = vpop.xlane.xlu0 %583
      %v585 = vsel %vm518, %v564, 0.0
      %586 = vadd.xlane.f32.xlu0 %v585
      %v587 = vpop.xlane.xlu0 %586
      %v588 = vsel %vm518, %v566, 0.0
      %589 = vadd.xlane.f32.xlu0 %v588
      %v590 = vpop.xlane.xlu0 %589
      %v591 = vrcp.pop %v569
      %v592 = vrcp.pop %v572
      %v593 = vrcp.pop %v575
      %v594 = vrcp.pop %v578
      %v595 = vrcp.pop %v581
      %v596 = vrcp.pop %v584
      %v597 = vrcp.pop %v587
      %v598 = vrcp.pop %v590
      %v599 = vmul.f32 %v552, %v591
      %v600 = vmul.f32 %v554, %v592
      %v601 = vmul.f32 %v556, %v593
      %v602 = vmul.f32 %v558, %v594
      %v603 = vmul.f32 %v560, %v595
      %v604 = vmul.f32 %v562, %v596
      %v605 = vmul.f32 %v564, %v597
      %v606 = vmul.f32 %v566, %v598
      %607 = vrot.lane.b32.xlu0 %v302, 64
      %v608 = vpop.permute.xlu0 %607
      %609 = vrot.lane.b32.xlu0 %v307, 64
      %v610 = vpop.permute.xlu0 %609
      %611 = vrot.lane.b32.xlu0 %v312, 64
      %v612 = vpop.permute.xlu0 %611
      %613 = vrot.lane.b32.xlu0 %v317, 64
      %v614 = vpop.permute.xlu0 %613
      %615 = vrot.lane.b32.xlu0 %v322, 64
      %v616 = vpop.permute.xlu0 %615
      %617 = vrot.lane.b32.xlu0 %v327, 64
      %v618 = vpop.permute.xlu0 %617
      %619 = vrot.lane.b32.xlu0 %v332, 64
      %v620 = vpop.permute.xlu0 %619
      %621 = vrot.lane.b32.xlu0 %v337, 64
      %v622 = vpop.permute.xlu0 %621
      %v632 = vsel %vm518, %v599, 0
      %v635 = vsel %vm518, %v600, 0
      %v638 = vsel %vm518, %v601, 0
      %v641 = vsel %vm518, %v602, 0
      %v644 = vsel %vm518, %v603, 0
      %v647 = vsel %vm518, %v604, 0
      %v650 = vsel %vm518, %v605, 0
      %v653 = vsel %vm518, %v606, 0
      %655 = vmatprep.subr.mxu0 0.0
      %656 = vmatpush1.msra.mxu0 0.0
      %657 = vmatprep.subr.mxu0 0.0
      %658 = vmatpush1.msra.mxu0 0.0
      %659 = vmatprep.subr.mxu0 0.0
      %660 = vmatpush1.msra.mxu0 0.0
      %661 = vmatprep.subr.mxu0 0.0
      %662 = vmatpush1.msra.mxu0 0.0
      %663 = vmatprep.subr.mxu0 0.0
      %664 = vmatpush1.msra.mxu0 0.0
      %665 = vmatprep.subr.mxu0 0.0
      %666 = vmatpush1.msra.mxu0 0.0
      %667 = vmatprep.subr.mxu0 0.0
      %668 = vmatpush1.msra.mxu0 0.0
      %669 = vmatprep.subr.mxu0 0.0
      %670 = vmatpush1.msra.mxu0 0.0
      %671 = vmatprep.subr.mxu0 0.0
      %672 = vmatpush1.msra.mxu0 %v622
      %673 = vmatprep.subr.mxu0 0.0
      %674 = vmatpush1.msra.mxu0 %v620
      %675 = vmatprep.subr.mxu0 0.0
      %676 = vmatpush1.msra.mxu0 %v618
      %677 = vmatprep.subr.mxu0 0.0
      %678 = vmatpush1.msra.mxu0 %v616
      %679 = vmatprep.subr.mxu0 0.0
      %680 = vmatpush1.msra.mxu0 %v614
      %681 = vmatprep.subr.mxu0 0.0
      %682 = vmatpush1.msra.mxu0 %v612
      %683 = vmatprep.subr.mxu0 0.0
      %684 = vmatpush1.msra.mxu0 %v610
      %685 = vmatprep.subr.mxu0 0.0
      %686 = vmatpush1.msra.mxu0 %v608
      %687 = vmatprep.subr.mxu0 0.0
      %688 = vmatpush2.msra.mxu0 0.0
      %689 = vmatprep.subr.mxu0 0.0
      %690 = vmatpush2.msra.mxu0 0.0
      %691 = vmatprep.subr.mxu0 0.0
      %692 = vmatpush2.msra.mxu0 0.0
      %693 = vmatprep.subr.mxu0 0.0
      %694 = vmatpush2.msra.mxu0 0.0
      %695 = vmatprep.subr.mxu0 0.0
      %696 = vmatpush2.msra.mxu0 0.0
      %697 = vmatprep.subr.mxu0 0.0
      %698 = vmatpush2.msra.mxu0 0.0
      %699 = vmatprep.subr.mxu0 0.0
      %700 = vmatpush2.msra.mxu0 0.0
      %701 = vmatprep.subr.mxu0 0.0
      %702 = vmatpush2.msra.mxu0 0.0
      %703 = vmatprep.subr.mxu0 0.0
      %704 = vmatpush2.msra.mxu0 0.0
      %705 = vmatprep.subr.mxu0 0.0
      %706 = vmatpush2.msra.mxu0 0.0
      %707 = vmatprep.subr.mxu0 0.0
      %708 = vmatpush2.msra.mxu0 0.0
      %709 = vmatprep.subr.mxu0 0.0
      %710 = vmatpush2.msra.mxu0 0.0
      %711 = vmatprep.subr.mxu0 0.0
      %712 = vmatpush2.msra.mxu0 0.0
      %713 = vmatprep.subr.mxu0 0.0
      %714 = vmatpush2.msra.mxu0 0.0
      %715 = vmatprep.subr.mxu0 0.0
      %716 = vmatpush2.msra.mxu0 0.0
      %717 = vmatprep.subr.mxu0 0.0
      %718 = vmatpush2.msra.mxu0 0.0
      %719 = vmatprep.mubr.f32.mxu0 0.0
      %720 = vmatmul.mubr.f32.gmra.mxu0 %v632
      %v721 = vpop.f32.mrf.mxu0
      %v722 = vadd.f32 0.0, %v721
      %v723 = vpop.f32.mrf.mxu0
      %724 = vmatprep.mubr.f32.mxu0 0.0
      %725 = vmatmul.mubr.f32.gmra.mxu0 %v635
      %v726 = vpop.f32.mrf.mxu0
      %v727 = vadd.f32 0.0, %v726
      %v728 = vpop.f32.mrf.mxu0
      %729 = vmatprep.mubr.f32.mxu0 0.0
      %730 = vmatmul.mubr.f32.gmra.mxu0 %v638
      %v731 = vpop.f32.mrf.mxu0
      %v732 = vadd.f32 0.0, %v731
      %v733 = vpop.f32.mrf.mxu0
      %734 = vmatprep.mubr.f32.mxu0 0.0
      %735 = vmatmul.mubr.f32.gmra.mxu0 %v641
      %v736 = vpop.f32.mrf.mxu0
      %v737 = vadd.f32 0.0, %v736
      %v738 = vpop.f32.mrf.mxu0
      %739 = vmatprep.mubr.f32.mxu0 0.0
      %740 = vmatmul.mubr.f32.gmra.mxu0 %v644
      %v741 = vpop.f32.mrf.mxu0
      %v742 = vadd.f32 0.0, %v741
      %v743 = vpop.f32.mrf.mxu0
      %744 = vmatprep.mubr.f32.mxu0 0.0
      %745 = vmatmul.mubr.f32.gmra.mxu0 %v647
      %v746 = vpop.f32.mrf.mxu0
      %v747 = vadd.f32 0.0, %v746
      %v748 = vpop.f32.mrf.mxu0
      %749 = vmatprep.mubr.f32.mxu0 0.0
      %750 = vmatmul.mubr.f32.gmra.mxu0 %v650
      %v751 = vpop.f32.mrf.mxu0
      %v752 = vadd.f32 0.0, %v751
      %v753 = vpop.f32.mrf.mxu0
      %754 = vmatprep.mubr.f32.mxu0 0.0
      %755 = vmatmul.mubr.f32.gmra.mxu0 %v653
      %v756 = vpop.f32.mrf.mxu0
      %v757 = vadd.f32 0.0, %v756
      %v758 = vpop.f32.mrf.mxu0
      %759 = vdwg.mxu0
      %v760 = vld [vmem:[%s2] sm:$0xff]
      %761 = vrot.lane.b32.xlu0 %v340, 120
      %v762 = vpop.permute.xlu0 %761
      %763 = vrot.lane.b32.xlu0 %v341, 120
      %v764 = vpop.permute.xlu0 %763
      %765 = vrot.lane.b32.xlu0 %v342, 120
      %v766 = vpop.permute.xlu0 %765
      %767 = vrot.lane.b32.xlu0 %v343, 120
      %v768 = vpop.permute.xlu0 %767
      %769 = vrot.lane.b32.xlu0 %v344, 120
      %v770 = vpop.permute.xlu0 %769
      %771 = vrot.lane.b32.xlu0 %v345, 120
      %v772 = vpop.permute.xlu0 %771
      %773 = vrot.lane.b32.xlu0 %v346, 120
      %v774 = vpop.permute.xlu0 %773
      %775 = vrot.lane.b32.xlu0 %v347, 120
      %v776 = vpop.permute.xlu0 %775
      %777 = vrot.lane.b32.xlu0 %v302, 88
      %v778 = vpop.permute.xlu0 %777
      %779 = vrot.lane.b32.xlu0 %v307, 88
      %v780 = vpop.permute.xlu0 %779
      %781 = vrot.lane.b32.xlu0 %v312, 88
      %v782 = vpop.permute.xlu0 %781
      %783 = vrot.lane.b32.xlu0 %v317, 88
      %v784 = vpop.permute.xlu0 %783
      %785 = vrot.lane.b32.xlu0 %v322, 88
      %v786 = vpop.permute.xlu0 %785
      %787 = vrot.lane.b32.xlu0 %v327, 88
      %v788 = vpop.permute.xlu0 %787
      %789 = vrot.lane.b32.xlu0 %v332, 88
      %v790 = vpop.permute.xlu0 %789
      %791 = vrot.lane.b32.xlu0 %v337, 88
      %v792 = vpop.permute.xlu0 %791
      %v793 = vsel %vm372, %v762, 0
      %v795 = vsel %vm372, %v764, 0
      %v797 = vsel %vm372, %v766, 0
      %v799 = vsel %vm372, %v768, 0
      %v801 = vsel %vm372, %v770, 0
      %v803 = vsel %vm372, %v772, 0
      %v805 = vsel %vm372, %v774, 0
      %v807 = vsel %vm372, %v776, 0
      %v809 = vsel %vm372, %v778, 0
      %v811 = vsel %vm372, %v780, 0
      %v813 = vsel %vm372, %v782, 0
      %v815 = vsel %vm372, %v784, 0
      %v817 = vsel %vm372, %v786, 0
      %v819 = vsel %vm372, %v788, 0
      %v821 = vsel %vm372, %v790, 0
      %v823 = vsel %vm372, %v792, 0
      %825 = vmatprep.subr.mxu0 0.0
      %826 = vmatpush1.xpose.msra.mxu0 0.0
      %827 = vmatprep.subr.mxu0 0.0
      %828 = vmatpush1.xpose.msra.mxu0 0.0
      %829 = vmatprep.subr.mxu0 0.0
      %830 = vmatpush1.xpose.msra.mxu0 0.0
      %831 = vmatprep.subr.mxu0 0.0
      %832 = vmatpush1.xpose.msra.mxu0 0.0
      %833 = vmatprep.subr.mxu0 0.0
      %834 = vmatpush1.xpose.msra.mxu0 0.0
      %835 = vmatprep.subr.mxu0 0.0
      %836 = vmatpush1.xpose.msra.mxu0 0.0
      %837 = vmatprep.subr.mxu0 0.0
      %838 = vmatpush1.xpose.msra.mxu0 0.0
      %839 = vmatprep.subr.mxu0 0.0
      %840 = vmatpush1.xpose.msra.mxu0 0.0
      %841 = vmatprep.subr.mxu0 0.0
      %842 = vmatpush1.xpose.msra.mxu0 %v823
      %843 = vmatprep.subr.mxu0 0.0
      %844 = vmatpush1.xpose.msra.mxu0 %v821
      %845 = vmatprep.subr.mxu0 0.0
      %846 = vmatpush1.xpose.msra.mxu0 %v819
      %847 = vmatprep.subr.mxu0 0.0
      %848 = vmatpush1.xpose.msra.mxu0 %v817
      %849 = vmatprep.subr.mxu0 0.0
      %850 = vmatpush1.xpose.msra.mxu0 %v815
      %851 = vmatprep.subr.mxu0 0.0
      %852 = vmatpush1.xpose.msra.mxu0 %v813
      %853 = vmatprep.subr.mxu0 0.0
      %854 = vmatpush1.xpose.msra.mxu0 %v811
      %855 = vmatprep.subr.mxu0 0.0
      %856 = vmatpush1.xpose.msra.mxu0 %v809
      %857 = vmatprep.subr.mxu0 0.0
      %858 = vmatpush2.xpose.msra.mxu0 0.0
      %859 = vmatprep.subr.mxu0 0.0
      %860 = vmatpush2.xpose.msra.mxu0 0.0
      %861 = vmatprep.subr.mxu0 0.0
      %862 = vmatpush2.xpose.msra.mxu0 0.0
      %863 = vmatprep.subr.mxu0 0.0
      %864 = vmatpush2.xpose.msra.mxu0 0.0
      %865 = vmatprep.subr.mxu0 0.0
      %866 = vmatpush2.xpose.msra.mxu0 0.0
      %867 = vmatprep.subr.mxu0 0.0
      %868 = vmatpush2.xpose.msra.mxu0 0.0
      %869 = vmatprep.subr.mxu0 0.0
      %870 = vmatpush2.xpose.msra.mxu0 0.0
      %871 = vmatprep.subr.mxu0 0.0
      %872 = vmatpush2.xpose.msra.mxu0 0.0
      %873 = vmatprep.subr.mxu0 0.0
      %874 = vmatpush2.xpose.msra.mxu0 0.0
      %875 = vmatprep.subr.mxu0 0.0
      %876 = vmatpush2.xpose.msra.mxu0 0.0
      %877 = vmatprep.subr.mxu0 0.0
      %878 = vmatpush2.xpose.msra.mxu0 0.0
      %879 = vmatprep.subr.mxu0 0.0
      %880 = vmatpush2.xpose.msra.mxu0 0.0
      %881 = vmatprep.subr.mxu0 0.0
      %882 = vmatpush2.xpose.msra.mxu0 0.0
      %883 = vmatprep.subr.mxu0 0.0
      %884 = vmatpush2.xpose.msra.mxu0 0.0
      %885 = vmatprep.subr.mxu0 0.0
      %886 = vmatpush2.xpose.msra.mxu0 0.0
      %887 = vmatprep.subr.mxu0 0.0
      %888 = vmatpush2.xpose.msra.mxu0 0.0
      %889 = vmatprep.mubr.f32.mxu0 0.0
      %890 = vmatmul.mubr.f32.gmra.mxu0 %v793
      %v891 = vpop.f32.mrf.mxu0
      %v892 = vadd.f32 0.0, %v891
      %v893 = vpop.f32.mrf.mxu0
      %894 = vmatprep.mubr.f32.mxu0 0.0
      %895 = vmatmul.mubr.f32.gmra.mxu0 %v795
      %v896 = vpop.f32.mrf.mxu0
      %v897 = vadd.f32 0.0, %v896
      %v898 = vpop.f32.mrf.mxu0
      %899 = vmatprep.mubr.f32.mxu0 0.0
      %900 = vmatmul.mubr.f32.gmra.mxu0 %v797
      %v901 = vpop.f32.mrf.mxu0
      %v902 = vadd.f32 0.0, %v901
      %v903 = vpop.f32.mrf.mxu0
      %904 = vmatprep.mubr.f32.mxu0 0.0
      %905 = vmatmul.mubr.f32.gmra.mxu0 %v799
      %v906 = vpop.f32.mrf.mxu0
      %v907 = vadd.f32 0.0, %v906
      %v908 = vpop.f32.mrf.mxu0
      %909 = vmatprep.mubr.f32.mxu0 0.0
      %910 = vmatmul.mubr.f32.gmra.mxu0 %v801
      %v911 = vpop.f32.mrf.mxu0
      %v912 = vadd.f32 0.0, %v911
      %v913 = vpop.f32.mrf.mxu0
      %914 = vmatprep.mubr.f32.mxu0 0.0
      %915 = vmatmul.mubr.f32.gmra.mxu0 %v803
      %v916 = vpop.f32.mrf.mxu0
      %v917 = vadd.f32 0.0, %v916
      %v918 = vpop.f32.mrf.mxu0
      %919 = vmatprep.mubr.f32.mxu0 0.0
      %920 = vmatmul.mubr.f32.gmra.mxu0 %v805
      %v921 = vpop.f32.mrf.mxu0
      %v922 = vadd.f32 0.0, %v921
      %v923 = vpop.f32.mrf.mxu0
      %924 = vmatprep.mubr.f32.mxu0 0.0
      %925 = vmatmul.mubr.f32.gmra.mxu0 %v807
      %v926 = vpop.f32.mrf.mxu0
      %v927 = vadd.f32 0.0, %v926
      %v928 = vpop.f32.mrf.mxu0
      %929 = vdwg.mxu0
      %v930 = vsel %vm518, %v892, -inf
      %931 = vmax.xlane.f32.xlu0 %v930
      %v932 = vpop.xlane.xlu0 %931
      %v933 = vsel %vm518, %v897, -inf
      %934 = vmax.xlane.f32.xlu0 %v933
      %v935 = vpop.xlane.xlu0 %934
      %v936 = vsel %vm518, %v902, -inf
      %937 = vmax.xlane.f32.xlu0 %v936
      %v938 = vpop.xlane.xlu0 %937
      %v939 = vsel %vm518, %v907, -inf
      %940 = vmax.xlane.f32.xlu0 %v939
      %v941 = vpop.xlane.xlu0 %940
      %v942 = vsel %vm518, %v912, -inf
      %943 = vmax.xlane.f32.xlu0 %v942
      %v944 = vpop.xlane.xlu0 %943
      %v945 = vsel %vm518, %v917, -inf
      %946 = vmax.xlane.f32.xlu0 %v945
      %v947 = vpop.xlane.xlu0 %946
      %v948 = vsel %vm518, %v922, -inf
      %949 = vmax.xlane.f32.xlu0 %v948
      %v950 = vpop.xlane.xlu0 %949
      %v951 = vsel %vm518, %v927, -inf
      %952 = vmax.xlane.f32.xlu0 %v951
      %v953 = vpop.xlane.xlu0 %952
      %v954 = vsub.f32 %v892, %v932
      %v955 = vsub.f32 %v897, %v935
      %v956 = vsub.f32 %v902, %v938
      %v957 = vsub.f32 %v907, %v941
      %v958 = vsub.f32 %v912, %v944
      %v959 = vsub.f32 %v917, %v947
      %v960 = vsub.f32 %v922, %v950
      %v961 = vsub.f32 %v927, %v953
      %v962 = vmul.f32 %v954, 1.442695
      %v963 = vpow.pop %v962
      %v964 = vmul.f32 %v955, 1.442695
      %v965 = vpow.pop %v964
      %v966 = vmul.f32 %v956, 1.442695
      %v967 = vpow.pop %v966
      %v968 = vmul.f32 %v957, 1.442695
      %v969 = vpow.pop %v968
      %v970 = vmul.f32 %v958, 1.442695
      %v971 = vpow.pop %v970
      %v972 = vmul.f32 %v959, 1.442695
      %v973 = vpow.pop %v972
      %v974 = vmul.f32 %v960, 1.442695
      %v975 = vpow.pop %v974
      %v976 = vmul.f32 %v961, 1.442695
      %v977 = vpow.pop %v976
      %v978 = vsel %vm518, %v963, 0.0
      %979 = vadd.xlane.f32.xlu0 %v978
      %v980 = vpop.xlane.xlu0 %979
      %v981 = vsel %vm518, %v965, 0.0
      %982 = vadd.xlane.f32.xlu0 %v981
      %v983 = vpop.xlane.xlu0 %982
      %v984 = vsel %vm518, %v967, 0.0
      %985 = vadd.xlane.f32.xlu0 %v984
      %v986 = vpop.xlane.xlu0 %985
      %v987 = vsel %vm518, %v969, 0.0
      %988 = vadd.xlane.f32.xlu0 %v987
      %v989 = vpop.xlane.xlu0 %988
      %v990 = vsel %vm518, %v971, 0.0
      %991 = vadd.xlane.f32.xlu0 %v990
      %v992 = vpop.xlane.xlu0 %991
      %v993 = vsel %vm518, %v973, 0.0
      %994 = vadd.xlane.f32.xlu0 %v993
      %v995 = vpop.xlane.xlu0 %994
      %v996 = vsel %vm518, %v975, 0.0
      %997 = vadd.xlane.f32.xlu0 %v996
      %v998 = vpop.xlane.xlu0 %997
      %v999 = vsel %vm518, %v977, 0.0
      %1000 = vadd.xlane.f32.xlu0 %v999
      %v1001 = vpop.xlane.xlu0 %1000
      %v1002 = vrcp.pop %v980
      %v1003 = vrcp.pop %v983
      %v1004 = vrcp.pop %v986
      %v1005 = vrcp.pop %v989
      %v1006 = vrcp.pop %v992
      %v1007 = vrcp.pop %v995
      %v1008 = vrcp.pop %v998
      %v1009 = vrcp.pop %v1001
      %v1010 = vmul.f32 %v963, %v1002
      %v1011 = vmul.f32 %v965, %v1003
      %v1012 = vmul.f32 %v967, %v1004
      %v1013 = vmul.f32 %v969, %v1005
      %v1014 = vmul.f32 %v971, %v1006
      %v1015 = vmul.f32 %v973, %v1007
      %v1016 = vmul.f32 %v975, %v1008
      %v1017 = vmul.f32 %v977, %v1009
      %1018 = vrot.lane.b32.xlu0 %v302, 56
      %v1019 = vpop.permute.xlu0 %1018
      %1020 = vrot.lane.b32.xlu0 %v307, 56
      %v1021 = vpop.permute.xlu0 %1020
      %1022 = vrot.lane.b32.xlu0 %v312, 56
      %v1023 = vpop.permute.xlu0 %1022
      %1024 = vrot.lane.b32.xlu0 %v317, 56
      %v1025 = vpop.permute.xlu0 %1024
      %1026 = vrot.lane.b32.xlu0 %v322, 56
      %v1027 = vpop.permute.xlu0 %1026
      %1028 = vrot.lane.b32.xlu0 %v327, 56
      %v1029 = vpop.permute.xlu0 %1028
      %1030 = vrot.lane.b32.xlu0 %v332, 56
      %v1031 = vpop.permute.xlu0 %1030
      %1032 = vrot.lane.b32.xlu0 %v337, 56
      %v1033 = vpop.permute.xlu0 %1032
      %v1043 = vsel %vm518, %v1010, 0
      %v1046 = vsel %vm518, %v1011, 0
      %v1049 = vsel %vm518, %v1012, 0
      %v1052 = vsel %vm518, %v1013, 0
      %v1055 = vsel %vm518, %v1014, 0
      %v1058 = vsel %vm518, %v1015, 0
      %v1061 = vsel %vm518, %v1016, 0
      %v1064 = vsel %vm518, %v1017, 0
      %1066 = vmatprep.subr.mxu0 0.0
      %1067 = vmatpush1.msra.mxu0 0.0
      %1068 = vmatprep.subr.mxu0 0.0
      %1069 = vmatpush1.msra.mxu0 0.0
      %1070 = vmatprep.subr.mxu0 0.0
      %1071 = vmatpush1.msra.mxu0 0.0
      %1072 = vmatprep.subr.mxu0 0.0
      %1073 = vmatpush1.msra.mxu0 0.0
      %1074 = vmatprep.subr.mxu0 0.0
      %1075 = vmatpush1.msra.mxu0 0.0
      %1076 = vmatprep.subr.mxu0 0.0
      %1077 = vmatpush1.msra.mxu0 0.0
      %1078 = vmatprep.subr.mxu0 0.0
      %1079 = vmatpush1.msra.mxu0 0.0
      %1080 = vmatprep.subr.mxu0 0.0
      %1081 = vmatpush1.msra.mxu0 0.0
      %1082 = vmatprep.subr.mxu0 0.0
      %1083 = vmatpush1.msra.mxu0 %v1033
      %1084 = vmatprep.subr.mxu0 0.0
      %1085 = vmatpush1.msra.mxu0 %v1031
      %1086 = vmatprep.subr.mxu0 0.0
      %1087 = vmatpush1.msra.mxu0 %v1029
      %1088 = vmatprep.subr.mxu0 0.0
      %1089 = vmatpush1.msra.mxu0 %v1027
      %1090 = vmatprep.subr.mxu0 0.0
      %1091 = vmatpush1.msra.mxu0 %v1025
      %1092 = vmatprep.subr.mxu0 0.0
      %1093 = vmatpush1.msra.mxu0 %v1023
      %1094 = vmatprep.subr.mxu0 0.0
      %1095 = vmatpush1.msra.mxu0 %v1021
      %1096 = vmatprep.subr.mxu0 0.0
      %1097 = vmatpush1.msra.mxu0 %v1019
      %1098 = vmatprep.subr.mxu0 0.0
      %1099 = vmatpush2.msra.mxu0 0.0
      %1100 = vmatprep.subr.mxu0 0.0
      %1101 = vmatpush2.msra.mxu0 0.0
      %1102 = vmatprep.subr.mxu0 0.0
      %1103 = vmatpush2.msra.mxu0 0.0
      %1104 = vmatprep.subr.mxu0 0.0
      %1105 = vmatpush2.msra.mxu0 0.0
      %1106 = vmatprep.subr.mxu0 0.0
      %1107 = vmatpush2.msra.mxu0 0.0
      %1108 = vmatprep.subr.mxu0 0.0
      %1109 = vmatpush2.msra.mxu0 0.0
      %1110 = vmatprep.subr.mxu0 0.0
      %1111 = vmatpush2.msra.mxu0 0.0
      %1112 = vmatprep.subr.mxu0 0.0
      %1113 = vmatpush2.msra.mxu0 0.0
      %1114 = vmatprep.subr.mxu0 0.0
      %1115 = vmatpush2.msra.mxu0 0.0
      %1116 = vmatprep.subr.mxu0 0.0
      %1117 = vmatpush2.msra.mxu0 0.0
      %1118 = vmatprep.subr.mxu0 0.0
      %1119 = vmatpush2.msra.mxu0 0.0
      %1120 = vmatprep.subr.mxu0 0.0
      %1121 = vmatpush2.msra.mxu0 0.0
      %1122 = vmatprep.subr.mxu0 0.0
      %1123 = vmatpush2.msra.mxu0 0.0
      %1124 = vmatprep.subr.mxu0 0.0
      %1125 = vmatpush2.msra.mxu0 0.0
      %1126 = vmatprep.subr.mxu0 0.0
      %1127 = vmatpush2.msra.mxu0 0.0
      %1128 = vmatprep.subr.mxu0 0.0
      %1129 = vmatpush2.msra.mxu0 0.0
      %1130 = vmatprep.mubr.f32.mxu0 0.0
      %1131 = vmatmul.mubr.f32.gmra.mxu0 %v1043
      %v1132 = vpop.f32.mrf.mxu0
      %v1133 = vadd.f32 0.0, %v1132
      %v1134 = vpop.f32.mrf.mxu0
      %1135 = vmatprep.mubr.f32.mxu0 0.0
      %1136 = vmatmul.mubr.f32.gmra.mxu0 %v1046
      %v1137 = vpop.f32.mrf.mxu0
      %v1138 = vadd.f32 0.0, %v1137
      %v1139 = vpop.f32.mrf.mxu0
      %1140 = vmatprep.mubr.f32.mxu0 0.0
      %1141 = vmatmul.mubr.f32.gmra.mxu0 %v1049
      %v1142 = vpop.f32.mrf.mxu0
      %v1143 = vadd.f32 0.0, %v1142
      %v1144 = vpop.f32.mrf.mxu0
      %1145 = vmatprep.mubr.f32.mxu0 0.0
      %1146 = vmatmul.mubr.f32.gmra.mxu0 %v1052
      %v1147 = vpop.f32.mrf.mxu0
      %v1148 = vadd.f32 0.0, %v1147
      %v1149 = vpop.f32.mrf.mxu0
      %1150 = vmatprep.mubr.f32.mxu0 0.0
      %1151 = vmatmul.mubr.f32.gmra.mxu0 %v1055
      %v1152 = vpop.f32.mrf.mxu0
      %v1153 = vadd.f32 0.0, %v1152
      %v1154 = vpop.f32.mrf.mxu0
      %1155 = vmatprep.mubr.f32.mxu0 0.0
      %1156 = vmatmul.mubr.f32.gmra.mxu0 %v1058
      %v1157 = vpop.f32.mrf.mxu0
      %v1158 = vadd.f32 0.0, %v1157
      %v1159 = vpop.f32.mrf.mxu0
      %1160 = vmatprep.mubr.f32.mxu0 0.0
      %1161 = vmatmul.mubr.f32.gmra.mxu0 %v1061
      %v1162 = vpop.f32.mrf.mxu0
      %v1163 = vadd.f32 0.0, %v1162
      %v1164 = vpop.f32.mrf.mxu0
      %1165 = vmatprep.mubr.f32.mxu0 0.0
      %1166 = vmatmul.mubr.f32.gmra.mxu0 %v1064
      %v1167 = vpop.f32.mrf.mxu0
      %v1168 = vadd.f32 0.0, %v1167
      %v1169 = vpop.f32.mrf.mxu0
      %1170 = vdwg.mxu0
      %v1171 = vld [vmem:[%s2 + $0x8] sm:$0xff]
      %v1173 = vsel %vm372, %v1133, 0
      %v1176 = vsel %vm372, %v1138, 0
      %v1179 = vsel %vm372, %v1143, 0
      %v1182 = vsel %vm372, %v1148, 0
      %v1185 = vsel %vm372, %v1153, 0
      %v1188 = vsel %vm372, %v1158, 0
      %v1191 = vsel %vm372, %v1163, 0
      %v1194 = vsel %vm372, %v1168, 0
      %1196 = vmatprep.subr.mxu0 0.0
      %1197 = vmatpush1.msra.mxu0 0.0
      %1198 = vmatprep.subr.mxu0 0.0
      %1199 = vmatpush1.msra.mxu0 0.0
      %1200 = vmatprep.subr.mxu0 0.0
      %1201 = vmatpush1.msra.mxu0 0.0
      %1202 = vmatprep.subr.mxu0 0.0
      %1203 = vmatpush1.msra.mxu0 0.0
      %1204 = vmatprep.subr.mxu0 0.0
      %1205 = vmatpush1.msra.mxu0 0.0
      %1206 = vmatprep.subr.mxu0 0.0
      %1207 = vmatpush1.msra.mxu0 0.0
      %1208 = vmatprep.subr.mxu0 0.0
      %1209 = vmatpush1.msra.mxu0 0.0
      %1210 = vmatprep.subr.mxu0 0.0
      %1211 = vmatpush1.msra.mxu0 0.0
      %1212 = vmatprep.subr.mxu0 0.0
      %1213 = vmatpush1.msra.mxu0 0.0
      %1214 = vmatprep.subr.mxu0 0.0
      %1215 = vmatpush1.msra.mxu0 0.0
      %1216 = vmatprep.subr.mxu0 0.0
      %1217 = vmatpush1.msra.mxu0 0.0
      %1218 = vmatprep.subr.mxu0 0.0
      %1219 = vmatpush1.msra.mxu0 0.0
      %1220 = vmatprep.subr.mxu0 0.0
      %1221 = vmatpush1.msra.mxu0 0.0
      %1222 = vmatprep.subr.mxu0 0.0
      %1223 = vmatpush1.msra.mxu0 0.0
      %1224 = vmatprep.subr.mxu0 0.0
      %1225 = vmatpush1.msra.mxu0 0.0
      %1226 = vmatprep.subr.mxu0 0.0
      %1227 = vmatpush1.msra.mxu0 %v1171
      %1228 = vmatprep.subr.mxu0 0.0
      %1229 = vmatpush2.msra.mxu0 0.0
      %1230 = vmatprep.subr.mxu0 0.0
      %1231 = vmatpush2.msra.mxu0 0.0
      %1232 = vmatprep.subr.mxu0 0.0
      %1233 = vmatpush2.msra.mxu0 0.0
      %1234 = vmatprep.subr.mxu0 0.0
      %1235 = vmatpush2.msra.mxu0 0.0
      %1236 = vmatprep.subr.mxu0 0.0
      %1237 = vmatpush2.msra.mxu0 0.0
      %1238 = vmatprep.subr.mxu0 0.0
      %1239 = vmatpush2.msra.mxu0 0.0
      %1240 = vmatprep.subr.mxu0 0.0
      %1241 = vmatpush2.msra.mxu0 0.0
      %1242 = vmatprep.subr.mxu0 0.0
      %1243 = vmatpush2.msra.mxu0 0.0
      %1244 = vmatprep.subr.mxu0 0.0
      %1245 = vmatpush2.msra.mxu0 0.0
      %1246 = vmatprep.subr.mxu0 0.0
      %1247 = vmatpush2.msra.mxu0 0.0
      %1248 = vmatprep.subr.mxu0 0.0
      %1249 = vmatpush2.msra.mxu0 0.0
      %1250 = vmatprep.subr.mxu0 0.0
      %1251 = vmatpush2.msra.mxu0 0.0
      %1252 = vmatprep.subr.mxu0 0.0
      %1253 = vmatpush2.msra.mxu0 0.0
      %1254 = vmatprep.subr.mxu0 0.0
      %1255 = vmatpush2.msra.mxu0 0.0
      %1256 = vmatprep.subr.mxu0 0.0
      %1257 = vmatpush2.msra.mxu0 0.0
      %1258 = vmatprep.subr.mxu0 0.0
      %1259 = vmatpush2.msra.mxu0 0.0
      %1260 = vmatprep.mubr.f32.mxu0 0.0
      %1261 = vmatmul.mubr.f32.gmra.mxu0 %v1173
      %v1262 = vpop.f32.mrf.mxu0
      %v1263 = vadd.f32 0.0, %v1262
      %v1264 = vpop.f32.mrf.mxu0
      %1265 = vmatprep.mubr.f32.mxu0 0.0
      %1266 = vmatmul.mubr.f32.gmra.mxu0 %v1176
      %v1267 = vpop.f32.mrf.mxu0
      %v1268 = vadd.f32 0.0, %v1267
      %v1269 = vpop.f32.mrf.mxu0
      %1270 = vmatprep.mubr.f32.mxu0 0.0
      %1271 = vmatmul.mubr.f32.gmra.mxu0 %v1179
      %v1272 = vpop.f32.mrf.mxu0
      %v1273 = vadd.f32 0.0, %v1272
      %v1274 = vpop.f32.mrf.mxu0
      %1275 = vmatprep.mubr.f32.mxu0 0.0
      %1276 = vmatmul.mubr.f32.gmra.mxu0 %v1182
      %v1277 = vpop.f32.mrf.mxu0
      %v1278 = vadd.f32 0.0, %v1277
      %v1279 = vpop.f32.mrf.mxu0
      %1280 = vmatprep.mubr.f32.mxu0 0.0
      %1281 = vmatmul.mubr.f32.gmra.mxu0 %v1185
      %v1282 = vpop.f32.mrf.mxu0
      %v1283 = vadd.f32 0.0, %v1282
      %v1284 = vpop.f32.mrf.mxu0
      %1285 = vmatprep.mubr.f32.mxu0 0.0
      %1286 = vmatmul.mubr.f32.gmra.mxu0 %v1188
      %v1287 = vpop.f32.mrf.mxu0
      %v1288 = vadd.f32 0.0, %v1287
      %v1289 = vpop.f32.mrf.mxu0
      %1290 = vmatprep.mubr.f32.mxu0 0.0
      %1291 = vmatmul.mubr.f32.gmra.mxu0 %v1191
      %v1292 = vpop.f32.mrf.mxu0
      %v1293 = vadd.f32 0.0, %v1292
      %v1294 = vpop.f32.mrf.mxu0
      %1295 = vmatprep.mubr.f32.mxu0 0.0
      %1296 = vmatmul.mubr.f32.gmra.mxu0 %v1194
      %v1297 = vpop.f32.mrf.mxu0
      %v1298 = vadd.f32 0.0, %v1297
      %v1299 = vpop.f32.mrf.mxu0
      %1300 = vdwg.mxu0
      %v1302 = vsel %vm372, %v722, 0
      %v1305 = vsel %vm372, %v727, 0
      %v1308 = vsel %vm372, %v732, 0
      %v1311 = vsel %vm372, %v737, 0
      %v1314 = vsel %vm372, %v742, 0
      %v1317 = vsel %vm372, %v747, 0
      %v1320 = vsel %vm372, %v752, 0
      %v1323 = vsel %vm372, %v757, 0
      %1325 = vmatprep.subr.mxu0 0.0
      %1326 = vmatpush1.msra.mxu0 0.0
      %1327 = vmatprep.subr.mxu0 0.0
      %1328 = vmatpush1.msra.mxu0 0.0
      %1329 = vmatprep.subr.mxu0 0.0
      %1330 = vmatpush1.msra.mxu0 0.0
      %1331 = vmatprep.subr.mxu0 0.0
      %1332 = vmatpush1.msra.mxu0 0.0
      %1333 = vmatprep.subr.mxu0 0.0
      %1334 = vmatpush1.msra.mxu0 0.0
      %1335 = vmatprep.subr.mxu0 0.0
      %1336 = vmatpush1.msra.mxu0 0.0
      %1337 = vmatprep.subr.mxu0 0.0
      %1338 = vmatpush1.msra.mxu0 0.0
      %1339 = vmatprep.subr.mxu0 0.0
      %1340 = vmatpush1.msra.mxu0 0.0
      %1341 = vmatprep.subr.mxu0 0.0
      %1342 = vmatpush1.msra.mxu0 0.0
      %1343 = vmatprep.subr.mxu0 0.0
      %1344 = vmatpush1.msra.mxu0 0.0
      %1345 = vmatprep.subr.mxu0 0.0
      %1346 = vmatpush1.msra.mxu0 0.0
      %1347 = vmatprep.subr.mxu0 0.0
      %1348 = vmatpush1.msra.mxu0 0.0
      %1349 = vmatprep.subr.mxu0 0.0
      %1350 = vmatpush1.msra.mxu0 0.0
      %1351 = vmatprep.subr.mxu0 0.0
      %1352 = vmatpush1.msra.mxu0 0.0
      %1353 = vmatprep.subr.mxu0 0.0
      %1354 = vmatpush1.msra.mxu0 0.0
      %1355 = vmatprep.subr.mxu0 0.0
      %1356 = vmatpush1.msra.mxu0 %v760
      %1357 = vmatprep.subr.mxu0 0.0
      %1358 = vmatpush2.msra.mxu0 0.0
      %1359 = vmatprep.subr.mxu0 0.0
      %1360 = vmatpush2.msra.mxu0 0.0
      %1361 = vmatprep.subr.mxu0 0.0
      %1362 = vmatpush2.msra.mxu0 0.0
      %1363 = vmatprep.subr.mxu0 0.0
      %1364 = vmatpush2.msra.mxu0 0.0
      %1365 = vmatprep.subr.mxu0 0.0
      %1366 = vmatpush2.msra.mxu0 0.0
      %1367 = vmatprep.subr.mxu0 0.0
      %1368 = vmatpush2.msra.mxu0 0.0
      %1369 = vmatprep.subr.mxu0 0.0
      %1370 = vmatpush2.msra.mxu0 0.0
      %1371 = vmatprep.subr.mxu0 0.0
      %1372 = vmatpush2.msra.mxu0 0.0
      %1373 = vmatprep.subr.mxu0 0.0
      %1374 = vmatpush2.msra.mxu0 0.0
      %1375 = vmatprep.subr.mxu0 0.0
      %1376 = vmatpush2.msra.mxu0 0.0
      %1377 = vmatprep.subr.mxu0 0.0
      %1378 = vmatpush2.msra.mxu0 0.0
      %1379 = vmatprep.subr.mxu0 0.0
      %1380 = vmatpush2.msra.mxu0 0.0
      %1381 = vmatprep.subr.mxu0 0.0
      %1382 = vmatpush2.msra.mxu0 0.0
      %1383 = vmatprep.subr.mxu0 0.0
      %1384 = vmatpush2.msra.mxu0 0.0
      %1385 = vmatprep.subr.mxu0 0.0
      %1386 = vmatpush2.msra.mxu0 0.0
      %1387 = vmatprep.subr.mxu0 0.0
      %1388 = vmatpush2.msra.mxu0 0.0
      %1389 = vmatprep.mubr.f32.mxu0 0.0
      %1390 = vmatmul.mubr.f32.gmra.mxu0 %v1302
      %v1391 = vpop.f32.mrf.mxu0
      %v1392 = vadd.f32 %v1263, %v1391
      %v1393 = vpop.f32.mrf.mxu0
      %1394 = vmatprep.mubr.f32.mxu0 0.0
      %1395 = vmatmul.mubr.f32.gmra.mxu0 %v1305
      %v1396 = vpop.f32.mrf.mxu0
      %v1397 = vadd.f32 %v1268, %v1396
      %v1398 = vpop.f32.mrf.mxu0
      %1399 = vmatprep.mubr.f32.mxu0 0.0
      %1400 = vmatmul.mubr.f32.gmra.mxu0 %v1308
      %v1401 = vpop.f32.mrf.mxu0
      %v1402 = vadd.f32 %v1273, %v1401
      %v1403 = vpop.f32.mrf.mxu0
      %1404 = vmatprep.mubr.f32.mxu0 0.0
      %1405 = vmatmul.mubr.f32.gmra.mxu0 %v1311
      %v1406 = vpop.f32.mrf.mxu0
      %v1407 = vadd.f32 %v1278, %v1406
      %v1408 = vpop.f32.mrf.mxu0
      %1409 = vmatprep.mubr.f32.mxu0 0.0
      %1410 = vmatmul.mubr.f32.gmra.mxu0 %v1314
      %v1411 = vpop.f32.mrf.mxu0
      %v1412 = vadd.f32 %v1283, %v1411
      %v1413 = vpop.f32.mrf.mxu0
      %1414 = vmatprep.mubr.f32.mxu0 0.0
      %1415 = vmatmul.mubr.f32.gmra.mxu0 %v1317
      %v1416 = vpop.f32.mrf.mxu0
      %v1417 = vadd.f32 %v1288, %v1416
      %v1418 = vpop.f32.mrf.mxu0
      %1419 = vmatprep.mubr.f32.mxu0 0.0
      %1420 = vmatmul.mubr.f32.gmra.mxu0 %v1320
      %v1421 = vpop.f32.mrf.mxu0
      %v1422 = vadd.f32 %v1293, %v1421
      %v1423 = vpop.f32.mrf.mxu0
      %1424 = vmatprep.mubr.f32.mxu0 0.0
      %1425 = vmatmul.mubr.f32.gmra.mxu0 %v1323
      %v1426 = vpop.f32.mrf.mxu0
      %v1427 = vadd.f32 %v1298, %v1426
      %v1428 = vpop.f32.mrf.mxu0
      %1429 = vdwg.mxu0
      %1430 = vrot.lane.b32.xlu0 %v340, 112
      %v1431 = vpop.permute.xlu0 %1430
      %1432 = vrot.lane.b32.xlu0 %v341, 112
      %v1433 = vpop.permute.xlu0 %1432
      %1434 = vrot.lane.b32.xlu0 %v342, 112
      %v1435 = vpop.permute.xlu0 %1434
      %1436 = vrot.lane.b32.xlu0 %v343, 112
      %v1437 = vpop.permute.xlu0 %1436
      %1438 = vrot.lane.b32.xlu0 %v344, 112
      %v1439 = vpop.permute.xlu0 %1438
      %1440 = vrot.lane.b32.xlu0 %v345, 112
      %v1441 = vpop.permute.xlu0 %1440
      %1442 = vrot.lane.b32.xlu0 %v346, 112
      %v1443 = vpop.permute.xlu0 %1442
      %1444 = vrot.lane.b32.xlu0 %v347, 112
      %v1445 = vpop.permute.xlu0 %1444
      %1446 = vrot.lane.b32.xlu0 %v302, 80
      %v1447 = vpop.permute.xlu0 %1446
      %1448 = vrot.lane.b32.xlu0 %v307, 80
      %v1449 = vpop.permute.xlu0 %1448
      %1450 = vrot.lane.b32.xlu0 %v312, 80
      %v1451 = vpop.permute.xlu0 %1450
      %1452 = vrot.lane.b32.xlu0 %v317, 80
      %v1453 = vpop.permute.xlu0 %1452
      %1454 = vrot.lane.b32.xlu0 %v322, 80
      %v1455 = vpop.permute.xlu0 %1454
      %1456 = vrot.lane.b32.xlu0 %v327, 80
      %v1457 = vpop.permute.xlu0 %1456
      %1458 = vrot.lane.b32.xlu0 %v332, 80
      %v1459 = vpop.permute.xlu0 %1458
      %1460 = vrot.lane.b32.xlu0 %v337, 80
      %v1461 = vpop.permute.xlu0 %1460
      %v1462 = vsel %vm372, %v1431, 0
      %v1464 = vsel %vm372, %v1433, 0
      %v1466 = vsel %vm372, %v1435, 0
      %v1468 = vsel %vm372, %v1437, 0
      %v1470 = vsel %vm372, %v1439, 0
      %v1472 = vsel %vm372, %v1441, 0
      %v1474 = vsel %vm372, %v1443, 0
      %v1476 = vsel %vm372, %v1445, 0
      %v1478 = vsel %vm372, %v1447, 0
      %v1480 = vsel %vm372, %v1449, 0
      %v1482 = vsel %vm372, %v1451, 0
      %v1484 = vsel %vm372, %v1453, 0
      %v1486 = vsel %vm372, %v1455, 0
      %v1488 = vsel %vm372, %v1457, 0
      %v1490 = vsel %vm372, %v1459, 0
      %v1492 = vsel %vm372, %v1461, 0
      %1494 = vmatprep.subr.mxu0 0.0
      %1495 = vmatpush1.xpose.msra.mxu0 0.0
      %1496 = vmatprep.subr.mxu0 0.0
      %1497 = vmatpush1.xpose.msra.mxu0 0.0
      %1498 = vmatprep.subr.mxu0 0.0
      %1499 = vmatpush1.xpose.msra.mxu0 0.0
      %1500 = vmatprep.subr.mxu0 0.0
      %1501 = vmatpush1.xpose.msra.mxu0 0.0
      %1502 = vmatprep.subr.mxu0 0.0
      %1503 = vmatpush1.xpose.msra.mxu0 0.0
      %1504 = vmatprep.subr.mxu0 0.0
      %1505 = vmatpush1.xpose.msra.mxu0 0.0
      %1506 = vmatprep.subr.mxu0 0.0
      %1507 = vmatpush1.xpose.msra.mxu0 0.0
      %1508 = vmatprep.subr.mxu0 0.0
      %1509 = vmatpush1.xpose.msra.mxu0 0.0
      %1510 = vmatprep.subr.mxu0 0.0
      %1511 = vmatpush1.xpose.msra.mxu0 %v1492
      %1512 = vmatprep.subr.mxu0 0.0
      %1513 = vmatpush1.xpose.msra.mxu0 %v1490
      %1514 = vmatprep.subr.mxu0 0.0
      %1515 = vmatpush1.xpose.msra.mxu0 %v1488
      %1516 = vmatprep.subr.mxu0 0.0
      %1517 = vmatpush1.xpose.msra.mxu0 %v1486
      %1518 = vmatprep.subr.mxu0 0.0
      %1519 = vmatpush1.xpose.msra.mxu0 %v1484
      %1520 = vmatprep.subr.mxu0 0.0
      %1521 = vmatpush1.xpose.msra.mxu0 %v1482
      %1522 = vmatprep.subr.mxu0 0.0
      %1523 = vmatpush1.xpose.msra.mxu0 %v1480
      %1524 = vmatprep.subr.mxu0 0.0
      %1525 = vmatpush1.xpose.msra.mxu0 %v1478
      %1526 = vmatprep.subr.mxu0 0.0
      %1527 = vmatpush2.xpose.msra.mxu0 0.0
      %1528 = vmatprep.subr.mxu0 0.0
      %1529 = vmatpush2.xpose.msra.mxu0 0.0
      %1530 = vmatprep.subr.mxu0 0.0
      %1531 = vmatpush2.xpose.msra.mxu0 0.0
      %1532 = vmatprep.subr.mxu0 0.0
      %1533 = vmatpush2.xpose.msra.mxu0 0.0
      %1534 = vmatprep.subr.mxu0 0.0
      %1535 = vmatpush2.xpose.msra.mxu0 0.0
      %1536 = vmatprep.subr.mxu0 0.0
      %1537 = vmatpush2.xpose.msra.mxu0 0.0
      %1538 = vmatprep.subr.mxu0 0.0
      %1539 = vmatpush2.xpose.msra.mxu0 0.0
      %1540 = vmatprep.subr.mxu0 0.0
      %1541 = vmatpush2.xpose.msra.mxu0 0.0
      %1542 = vmatprep.subr.mxu0 0.0
      %1543 = vmatpush2.xpose.msra.mxu0 0.0
      %1544 = vmatprep.subr.mxu0 0.0
      %1545 = vmatpush2.xpose.msra.mxu0 0.0
      %1546 = vmatprep.subr.mxu0 0.0
      %1547 = vmatpush2.xpose.msra.mxu0 0.0
      %1548 = vmatprep.subr.mxu0 0.0
      %1549 = vmatpush2.xpose.msra.mxu0 0.0
      %1550 = vmatprep.subr.mxu0 0.0
      %1551 = vmatpush2.xpose.msra.mxu0 0.0
      %1552 = vmatprep.subr.mxu0 0.0
      %1553 = vmatpush2.xpose.msra.mxu0 0.0
      %1554 = vmatprep.subr.mxu0 0.0
      %1555 = vmatpush2.xpose.msra.mxu0 0.0
      %1556 = vmatprep.subr.mxu0 0.0
      %1557 = vmatpush2.xpose.msra.mxu0 0.0
      %1558 = vmatprep.mubr.f32.mxu0 0.0
      %1559 = vmatmul.mubr.f32.gmra.mxu0 %v1462
      %v1560 = vpop.f32.mrf.mxu0
      %v1561 = vadd.f32 0.0, %v1560
      %v1562 = vpop.f32.mrf.mxu0
      %1563 = vmatprep.mubr.f32.mxu0 0.0
      %1564 = vmatmul.mubr.f32.gmra.mxu0 %v1464
      %v1565 = vpop.f32.mrf.mxu0
      %v1566 = vadd.f32 0.0, %v1565
      %v1567 = vpop.f32.mrf.mxu0
      %1568 = vmatprep.mubr.f32.mxu0 0.0
      %1569 = vmatmul.mubr.f32.gmra.mxu0 %v1466
      %v1570 = vpop.f32.mrf.mxu0
      %v1571 = vadd.f32 0.0, %v1570
      %v1572 = vpop.f32.mrf.mxu0
      %1573 = vmatprep.mubr.f32.mxu0 0.0
      %1574 = vmatmul.mubr.f32.gmra.mxu0 %v1468
      %v1575 = vpop.f32.mrf.mxu0
      %v1576 = vadd.f32 0.0, %v1575
      %v1577 = vpop.f32.mrf.mxu0
      %1578 = vmatprep.mubr.f32.mxu0 0.0
      %1579 = vmatmul.mubr.f32.gmra.mxu0 %v1470
      %v1580 = vpop.f32.mrf.mxu0
      %v1581 = vadd.f32 0.0, %v1580
      %v1582 = vpop.f32.mrf.mxu0
      %1583 = vmatprep.mubr.f32.mxu0 0.0
      %1584 = vmatmul.mubr.f32.gmra.mxu0 %v1472
      %v1585 = vpop.f32.mrf.mxu0
      %v1586 = vadd.f32 0.0, %v1585
      %v1587 = vpop.f32.mrf.mxu0
      %1588 = vmatprep.mubr.f32.mxu0 0.0
      %1589 = vmatmul.mubr.f32.gmra.mxu0 %v1474
      %v1590 = vpop.f32.mrf.mxu0
      %v1591 = vadd.f32 0.0, %v1590
      %v1592 = vpop.f32.mrf.mxu0
      %1593 = vmatprep.mubr.f32.mxu0 0.0
      %1594 = vmatmul.mubr.f32.gmra.mxu0 %v1476
      %v1595 = vpop.f32.mrf.mxu0
      %v1596 = vadd.f32 0.0, %v1595
      %v1597 = vpop.f32.mrf.mxu0
      %1598 = vdwg.mxu0
      %v1599 = vsel %vm518, %v1561, -inf
      %1600 = vmax.xlane.f32.xlu0 %v1599
      %v1601 = vpop.xlane.xlu0 %1600
      %v1602 = vsel %vm518, %v1566, -inf
      %1603 = vmax.xlane.f32.xlu0 %v1602
      %v1604 = vpop.xlane.xlu0 %1603
      %v1605 = vsel %vm518, %v1571, -inf
      %1606 = vmax.xlane.f32.xlu0 %v1605
      %v1607 = vpop.xlane.xlu0 %1606
      %v1608 = vsel %vm518, %v1576, -inf
      %1609 = vmax.xlane.f32.xlu0 %v1608
      %v1610 = vpop.xlane.xlu0 %1609
      %v1611 = vsel %vm518, %v1581, -inf
      %1612 = vmax.xlane.f32.xlu0 %v1611
      %v1613 = vpop.xlane.xlu0 %1612
      %v1614 = vsel %vm518, %v1586, -inf
      %1615 = vmax.xlane.f32.xlu0 %v1614
      %v1616 = vpop.xlane.xlu0 %1615
      %v1617 = vsel %vm518, %v1591, -inf
      %1618 = vmax.xlane.f32.xlu0 %v1617
      %v1619 = vpop.xlane.xlu0 %1618
      %v1620 = vsel %vm518, %v1596, -inf
      %1621 = vmax.xlane.f32.xlu0 %v1620
      %v1622 = vpop.xlane.xlu0 %1621
      %v1623 = vsub.f32 %v1561, %v1601
      %v1624 = vsub.f32 %v1566, %v1604
      %v1625 = vsub.f32 %v1571, %v1607
      %v1626 = vsub.f32 %v1576, %v1610
      %v1627 = vsub.f32 %v1581, %v1613
      %v1628 = vsub.f32 %v1586, %v1616
      %v1629 = vsub.f32 %v1591, %v1619
      %v1630 = vsub.f32 %v1596, %v1622
      %v1631 = vmul.f32 %v1623, 1.442695
      %v1632 = vpow.pop %v1631
      %v1633 = vmul.f32 %v1624, 1.442695
      %v1634 = vpow.pop %v1633
      %v1635 = vmul.f32 %v1625, 1.442695
      %v1636 = vpow.pop %v1635
      %v1637 = vmul.f32 %v1626, 1.442695
      %v1638 = vpow.pop %v1637
      %v1639 = vmul.f32 %v1627, 1.442695
      %v1640 = vpow.pop %v1639
      %v1641 = vmul.f32 %v1628, 1.442695
      %v1642 = vpow.pop %v1641
      %v1643 = vmul.f32 %v1629, 1.442695
      %v1644 = vpow.pop %v1643
      %v1645 = vmul.f32 %v1630, 1.442695
      %v1646 = vpow.pop %v1645
      %v1647 = vsel %vm518, %v1632, 0.0
      %1648 = vadd.xlane.f32.xlu0 %v1647
      %v1649 = vpop.xlane.xlu0 %1648
      %v1650 = vsel %vm518, %v1634, 0.0
      %1651 = vadd.xlane.f32.xlu0 %v1650
      %v1652 = vpop.xlane.xlu0 %1651
      %v1653 = vsel %vm518, %v1636, 0.0
      %1654 = vadd.xlane.f32.xlu0 %v1653
      %v1655 = vpop.xlane.xlu0 %1654
      %v1656 = vsel %vm518, %v1638, 0.0
      %1657 = vadd.xlane.f32.xlu0 %v1656
      %v1658 = vpop.xlane.xlu0 %1657
      %v1659 = vsel %vm518, %v1640, 0.0
      %1660 = vadd.xlane.f32.xlu0 %v1659
      %v1661 = vpop.xlane.xlu0 %1660
      %v1662 = vsel %vm518, %v1642, 0.0
      %1663 = vadd.xlane.f32.xlu0 %v1662
      %v1664 = vpop.xlane.xlu0 %1663
      %v1665 = vsel %vm518, %v1644, 0.0
      %1666 = vadd.xlane.f32.xlu0 %v1665
      %v1667 = vpop.xlane.xlu0 %1666
      %v1668 = vsel %vm518, %v1646, 0.0
      %1669 = vadd.xlane.f32.xlu0 %v1668
      %v1670 = vpop.xlane.xlu0 %1669
      %v1671 = vrcp.pop %v1649
      %v1672 = vrcp.pop %v1652
      %v1673 = vrcp.pop %v1655
      %v1674 = vrcp.pop %v1658
      %v1675 = vrcp.pop %v1661
      %v1676 = vrcp.pop %v1664
      %v1677 = vrcp.pop %v1667
      %v1678 = vrcp.pop %v1670
      %v1679 = vmul.f32 %v1632, %v1671
      %v1680 = vmul.f32 %v1634, %v1672
      %v1681 = vmul.f32 %v1636, %v1673
      %v1682 = vmul.f32 %v1638, %v1674
      %v1683 = vmul.f32 %v1640, %v1675
      %v1684 = vmul.f32 %v1642, %v1676
      %v1685 = vmul.f32 %v1644, %v1677
      %v1686 = vmul.f32 %v1646, %v1678
      %1687 = vrot.lane.b32.xlu0 %v302, 48
      %v1688 = vpop.permute.xlu0 %1687
      %1689 = vrot.lane.b32.xlu0 %v307, 48
      %v1690 = vpop.permute.xlu0 %1689
      %1691 = vrot.lane.b32.xlu0 %v312, 48
      %v1692 = vpop.permute.xlu0 %1691
      %1693 = vrot.lane.b32.xlu0 %v317, 48
      %v1694 = vpop.permute.xlu0 %1693
      %1695 = vrot.lane.b32.xlu0 %v322, 48
      %v1696 = vpop.permute.xlu0 %1695
      %1697 = vrot.lane.b32.xlu0 %v327, 48
      %v1698 = vpop.permute.xlu0 %1697
      %1699 = vrot.lane.b32.xlu0 %v332, 48
      %v1700 = vpop.permute.xlu0 %1699
      %1701 = vrot.lane.b32.xlu0 %v337, 48
      %v1702 = vpop.permute.xlu0 %1701
      %v1712 = vsel %vm518, %v1679, 0
      %v1715 = vsel %vm518, %v1680, 0
      %v1718 = vsel %vm518, %v1681, 0
      %v1721 = vsel %vm518, %v1682, 0
      %v1724 = vsel %vm518, %v1683, 0
      %v1727 = vsel %vm518, %v1684, 0
      %v1730 = vsel %vm518, %v1685, 0
      %v1733 = vsel %vm518, %v1686, 0
      %1735 = vmatprep.subr.mxu0 0.0
      %1736 = vmatpush1.msra.mxu0 0.0
      %1737 = vmatprep.subr.mxu0 0.0
      %1738 = vmatpush1.msra.mxu0 0.0
      %1739 = vmatprep.subr.mxu0 0.0
      %1740 = vmatpush1.msra.mxu0 0.0
      %1741 = vmatprep.subr.mxu0 0.0
      %1742 = vmatpush1.msra.mxu0 0.0
      %1743 = vmatprep.subr.mxu0 0.0
      %1744 = vmatpush1.msra.mxu0 0.0
      %1745 = vmatprep.subr.mxu0 0.0
      %1746 = vmatpush1.msra.mxu0 0.0
      %1747 = vmatprep.subr.mxu0 0.0
      %1748 = vmatpush1.msra.mxu0 0.0
      %1749 = vmatprep.subr.mxu0 0.0
      %1750 = vmatpush1.msra.mxu0 0.0
      %1751 = vmatprep.subr.mxu0 0.0
      %1752 = vmatpush1.msra.mxu0 %v1702
      %1753 = vmatprep.subr.mxu0 0.0
      %1754 = vmatpush1.msra.mxu0 %v1700
      %1755 = vmatprep.subr.mxu0 0.0
      %1756 = vmatpush1.msra.mxu0 %v1698
      %1757 = vmatprep.subr.mxu0 0.0
      %1758 = vmatpush1.msra.mxu0 %v1696
      %1759 = vmatprep.subr.mxu0 0.0
      %1760 = vmatpush1.msra.mxu0 %v1694
      %1761 = vmatprep.subr.mxu0 0.0
      %1762 = vmatpush1.msra.mxu0 %v1692
      %1763 = vmatprep.subr.mxu0 0.0
      %1764 = vmatpush1.msra.mxu0 %v1690
      %1765 = vmatprep.subr.mxu0 0.0
      %1766 = vmatpush1.msra.mxu0 %v1688
      %1767 = vmatprep.subr.mxu0 0.0
      %1768 = vmatpush2.msra.mxu0 0.0
      %1769 = vmatprep.subr.mxu0 0.0
      %1770 = vmatpush2.msra.mxu0 0.0
      %1771 = vmatprep.subr.mxu0 0.0
      %1772 = vmatpush2.msra.mxu0 0.0
      %1773 = vmatprep.subr.mxu0 0.0
      %1774 = vmatpush2.msra.mxu0 0.0
      %1775 = vmatprep.subr.mxu0 0.0
      %1776 = vmatpush2.msra.mxu0 0.0
      %1777 = vmatprep.subr.mxu0 0.0
      %1778 = vmatpush2.msra.mxu0 0.0
      %1779 = vmatprep.subr.mxu0 0.0
      %1780 = vmatpush2.msra.mxu0 0.0
      %1781 = vmatprep.subr.mxu0 0.0
      %1782 = vmatpush2.msra.mxu0 0.0
      %1783 = vmatprep.subr.mxu0 0.0
      %1784 = vmatpush2.msra.mxu0 0.0
      %1785 = vmatprep.subr.mxu0 0.0
      %1786 = vmatpush2.msra.mxu0 0.0
      %1787 = vmatprep.subr.mxu0 0.0
      %1788 = vmatpush2.msra.mxu0 0.0
      %1789 = vmatprep.subr.mxu0 0.0
      %1790 = vmatpush2.msra.mxu0 0.0
      %1791 = vmatprep.subr.mxu0 0.0
      %1792 = vmatpush2.msra.mxu0 0.0
      %1793 = vmatprep.subr.mxu0 0.0
      %1794 = vmatpush2.msra.mxu0 0.0
      %1795 = vmatprep.subr.mxu0 0.0
      %1796 = vmatpush2.msra.mxu0 0.0
      %1797 = vmatprep.subr.mxu0 0.0
      %1798 = vmatpush2.msra.mxu0 0.0
      %1799 = vmatprep.mubr.f32.mxu0 0.0
      %1800 = vmatmul.mubr.f32.gmra.mxu0 %v1712
      %v1801 = vpop.f32.mrf.mxu0
      %v1802 = vadd.f32 0.0, %v1801
      %v1803 = vpop.f32.mrf.mxu0
      %1804 = vmatprep.mubr.f32.mxu0 0.0
      %1805 = vmatmul.mubr.f32.gmra.mxu0 %v1715
      %v1806 = vpop.f32.mrf.mxu0
      %v1807 = vadd.f32 0.0, %v1806
      %v1808 = vpop.f32.mrf.mxu0
      %1809 = vmatprep.mubr.f32.mxu0 0.0
      %1810 = vmatmul.mubr.f32.gmra.mxu0 %v1718
      %v1811 = vpop.f32.mrf.mxu0
      %v1812 = vadd.f32 0.0, %v1811
      %v1813 = vpop.f32.mrf.mxu0
      %1814 = vmatprep.mubr.f32.mxu0 0.0
      %1815 = vmatmul.mubr.f32.gmra.mxu0 %v1721
      %v1816 = vpop.f32.mrf.mxu0
      %v1817 = vadd.f32 0.0, %v1816
      %v1818 = vpop.f32.mrf.mxu0
      %1819 = vmatprep.mubr.f32.mxu0 0.0
      %1820 = vmatmul.mubr.f32.gmra.mxu0 %v1724
      %v1821 = vpop.f32.mrf.mxu0
      %v1822 = vadd.f32 0.0, %v1821
      %v1823 = vpop.f32.mrf.mxu0
      %1824 = vmatprep.mubr.f32.mxu0 0.0
      %1825 = vmatmul.mubr.f32.gmra.mxu0 %v1727
      %v1826 = vpop.f32.mrf.mxu0
      %v1827 = vadd.f32 0.0, %v1826
      %v1828 = vpop.f32.mrf.mxu0
      %1829 = vmatprep.mubr.f32.mxu0 0.0
      %1830 = vmatmul.mubr.f32.gmra.mxu0 %v1730
      %v1831 = vpop.f32.mrf.mxu0
      %v1832 = vadd.f32 0.0, %v1831
      %v1833 = vpop.f32.mrf.mxu0
      %1834 = vmatprep.mubr.f32.mxu0 0.0
      %1835 = vmatmul.mubr.f32.gmra.mxu0 %v1733
      %v1836 = vpop.f32.mrf.mxu0
      %v1837 = vadd.f32 0.0, %v1836
      %v1838 = vpop.f32.mrf.mxu0
      %1839 = vdwg.mxu0
      %v1840 = vld [vmem:[%s2 + $0x10] sm:$0xff]
      %v1842 = vsel %vm372, %v1802, 0
      %v1845 = vsel %vm372, %v1807, 0
      %v1848 = vsel %vm372, %v1812, 0
      %v1851 = vsel %vm372, %v1817, 0
      %v1854 = vsel %vm372, %v1822, 0
      %v1857 = vsel %vm372, %v1827, 0
      %v1860 = vsel %vm372, %v1832, 0
      %v1863 = vsel %vm372, %v1837, 0
      %1865 = vmatprep.subr.mxu0 0.0
      %1866 = vmatpush1.msra.mxu0 0.0
      %1867 = vmatprep.subr.mxu0 0.0
      %1868 = vmatpush1.msra.mxu0 0.0
      %1869 = vmatprep.subr.mxu0 0.0
      %1870 = vmatpush1.msra.mxu0 0.0
      %1871 = vmatprep.subr.mxu0 0.0
      %1872 = vmatpush1.msra.mxu0 0.0
      %1873 = vmatprep.subr.mxu0 0.0
      %1874 = vmatpush1.msra.mxu0 0.0
      %1875 = vmatprep.subr.mxu0 0.0
      %1876 = vmatpush1.msra.mxu0 0.0
      %1877 = vmatprep.subr.mxu0 0.0
      %1878 = vmatpush1.msra.mxu0 0.0
      %1879 = vmatprep.subr.mxu0 0.0
      %1880 = vmatpush1.msra.mxu0 0.0
      %1881 = vmatprep.subr.mxu0 0.0
      %1882 = vmatpush1.msra.mxu0 0.0
      %1883 = vmatprep.subr.mxu0 0.0
      %1884 = vmatpush1.msra.mxu0 0.0
      %1885 = vmatprep.subr.mxu0 0.0
      %1886 = vmatpush1.msra.mxu0 0.0
      %1887 = vmatprep.subr.mxu0 0.0
      %1888 = vmatpush1.msra.mxu0 0.0
      %1889 = vmatprep.subr.mxu0 0.0
      %1890 = vmatpush1.msra.mxu0 0.0
      %1891 = vmatprep.subr.mxu0 0.0
      %1892 = vmatpush1.msra.mxu0 0.0
      %1893 = vmatprep.subr.mxu0 0.0
      %1894 = vmatpush1.msra.mxu0 0.0
      %1895 = vmatprep.subr.mxu0 0.0
      %1896 = vmatpush1.msra.mxu0 %v1840
      %1897 = vmatprep.subr.mxu0 0.0
      %1898 = vmatpush2.msra.mxu0 0.0
      %1899 = vmatprep.subr.mxu0 0.0
      %1900 = vmatpush2.msra.mxu0 0.0
      %1901 = vmatprep.subr.mxu0 0.0
      %1902 = vmatpush2.msra.mxu0 0.0
      %1903 = vmatprep.subr.mxu0 0.0
      %1904 = vmatpush2.msra.mxu0 0.0
      %1905 = vmatprep.subr.mxu0 0.0
      %1906 = vmatpush2.msra.mxu0 0.0
      %1907 = vmatprep.subr.mxu0 0.0
      %1908 = vmatpush2.msra.mxu0 0.0
      %1909 = vmatprep.subr.mxu0 0.0
      %1910 = vmatpush2.msra.mxu0 0.0
      %1911 = vmatprep.subr.mxu0 0.0
      %1912 = vmatpush2.msra.mxu0 0.0
      %1913 = vmatprep.subr.mxu0 0.0
      %1914 = vmatpush2.msra.mxu0 0.0
      %1915 = vmatprep.subr.mxu0 0.0
      %1916 = vmatpush2.msra.mxu0 0.0
      %1917 = vmatprep.subr.mxu0 0.0
      %1918 = vmatpush2.msra.mxu0 0.0
      %1919 = vmatprep.subr.mxu0 0.0
      %1920 = vmatpush2.msra.mxu0 0.0
      %1921 = vmatprep.subr.mxu0 0.0
      %1922 = vmatpush2.msra.mxu0 0.0
      %1923 = vmatprep.subr.mxu0 0.0
      %1924 = vmatpush2.msra.mxu0 0.0
      %1925 = vmatprep.subr.mxu0 0.0
      %1926 = vmatpush2.msra.mxu0 0.0
      %1927 = vmatprep.subr.mxu0 0.0
      %1928 = vmatpush2.msra.mxu0 0.0
      %1929 = vmatprep.mubr.f32.mxu0 0.0
      %1930 = vmatmul.mubr.f32.gmra.mxu0 %v1842
      %v1931 = vpop.f32.mrf.mxu0
      %v1932 = vadd.f32 0.0, %v1931
      %v1933 = vpop.f32.mrf.mxu0
      %1934 = vmatprep.mubr.f32.mxu0 0.0
      %1935 = vmatmul.mubr.f32.gmra.mxu0 %v1845
      %v1936 = vpop.f32.mrf.mxu0
      %v1937 = vadd.f32 0.0, %v1936
      %v1938 = vpop.f32.mrf.mxu0
      %1939 = vmatprep.mubr.f32.mxu0 0.0
      %1940 = vmatmul.mubr.f32.gmra.mxu0 %v1848
      %v1941 = vpop.f32.mrf.mxu0
      %v1942 = vadd.f32 0.0, %v1941
      %v1943 = vpop.f32.mrf.mxu0
      %1944 = vmatprep.mubr.f32.mxu0 0.0
      %1945 = vmatmul.mubr.f32.gmra.mxu0 %v1851
      %v1946 = vpop.f32.mrf.mxu0
      %v1947 = vadd.f32 0.0, %v1946
      %v1948 = vpop.f32.mrf.mxu0
      %1949 = vmatprep.mubr.f32.mxu0 0.0
      %1950 = vmatmul.mubr.f32.gmra.mxu0 %v1854
      %v1951 = vpop.f32.mrf.mxu0
      %v1952 = vadd.f32 0.0, %v1951
      %v1953 = vpop.f32.mrf.mxu0
      %1954 = vmatprep.mubr.f32.mxu0 0.0
      %1955 = vmatmul.mubr.f32.gmra.mxu0 %v1857
      %v1956 = vpop.f32.mrf.mxu0
      %v1957 = vadd.f32 0.0, %v1956
      %v1958 = vpop.f32.mrf.mxu0
      %1959 = vmatprep.mubr.f32.mxu0 0.0
      %1960 = vmatmul.mubr.f32.gmra.mxu0 %v1860
      %v1961 = vpop.f32.mrf.mxu0
      %v1962 = vadd.f32 0.0, %v1961
      %v1963 = vpop.f32.mrf.mxu0
      %1964 = vmatprep.mubr.f32.mxu0 0.0
      %1965 = vmatmul.mubr.f32.gmra.mxu0 %v1863
      %v1966 = vpop.f32.mrf.mxu0
      %v1967 = vadd.f32 0.0, %v1966
      %v1968 = vpop.f32.mrf.mxu0
      %1969 = vdwg.mxu0
      %v1970 = vadd.f32 %v1392, %v1932
      %v1971 = vadd.f32 %v1397, %v1937
      %v1972 = vadd.f32 %v1402, %v1942
      %v1973 = vadd.f32 %v1407, %v1947
      %v1974 = vadd.f32 %v1412, %v1952
      %v1975 = vadd.f32 %v1417, %v1957
      %v1976 = vadd.f32 %v1422, %v1962
      %v1977 = vadd.f32 %v1427, %v1967
      %1978 = vrot.lane.b32.xlu0 %v340, 104
      %v1979 = vpop.permute.xlu0 %1978
      %1980 = vrot.lane.b32.xlu0 %v341, 104
      %v1981 = vpop.permute.xlu0 %1980
      %1982 = vrot.lane.b32.xlu0 %v342, 104
      %v1983 = vpop.permute.xlu0 %1982
      %1984 = vrot.lane.b32.xlu0 %v343, 104
      %v1985 = vpop.permute.xlu0 %1984
      %1986 = vrot.lane.b32.xlu0 %v344, 104
      %v1987 = vpop.permute.xlu0 %1986
      %1988 = vrot.lane.b32.xlu0 %v345, 104
      %v1989 = vpop.permute.xlu0 %1988
      %1990 = vrot.lane.b32.xlu0 %v346, 104
      %v1991 = vpop.permute.xlu0 %1990
      %1992 = vrot.lane.b32.xlu0 %v347, 104
      %v1993 = vpop.permute.xlu0 %1992
      %1994 = vrot.lane.b32.xlu0 %v302, 72
      %v1995 = vpop.permute.xlu0 %1994
      %1996 = vrot.lane.b32.xlu0 %v307, 72
      %v1997 = vpop.permute.xlu0 %1996
      %1998 = vrot.lane.b32.xlu0 %v312, 72
      %v1999 = vpop.permute.xlu0 %1998
      %2000 = vrot.lane.b32.xlu0 %v317, 72
      %v2001 = vpop.permute.xlu0 %2000
      %2002 = vrot.lane.b32.xlu0 %v322, 72
      %v2003 = vpop.permute.xlu0 %2002
      %2004 = vrot.lane.b32.xlu0 %v327, 72
      %v2005 = vpop.permute.xlu0 %2004
      %2006 = vrot.lane.b32.xlu0 %v332, 72
      %v2007 = vpop.permute.xlu0 %2006
      %2008 = vrot.lane.b32.xlu0 %v337, 72
      %v2009 = vpop.permute.xlu0 %2008
      %v2010 = vsel %vm372, %v1979, 0
      %v2012 = vsel %vm372, %v1981, 0
      %v2014 = vsel %vm372, %v1983, 0
      %v2016 = vsel %vm372, %v1985, 0
      %v2018 = vsel %vm372, %v1987, 0
      %v2020 = vsel %vm372, %v1989, 0
      %v2022 = vsel %vm372, %v1991, 0
      %v2024 = vsel %vm372, %v1993, 0
      %v2026 = vsel %vm372, %v1995, 0
      %v2028 = vsel %vm372, %v1997, 0
      %v2030 = vsel %vm372, %v1999, 0
      %v2032 = vsel %vm372, %v2001, 0
      %v2034 = vsel %vm372, %v2003, 0
      %v2036 = vsel %vm372, %v2005, 0
      %v2038 = vsel %vm372, %v2007, 0
      %v2040 = vsel %vm372, %v2009, 0
      %2042 = vmatprep.subr.mxu0 0.0
      %2043 = vmatpush1.xpose.msra.mxu0 0.0
      %2044 = vmatprep.subr.mxu0 0.0
      %2045 = vmatpush1.xpose.msra.mxu0 0.0
      %2046 = vmatprep.subr.mxu0 0.0
      %2047 = vmatpush1.xpose.msra.mxu0 0.0
      %2048 = vmatprep.subr.mxu0 0.0
      %2049 = vmatpush1.xpose.msra.mxu0 0.0
      %2050 = vmatprep.subr.mxu0 0.0
      %2051 = vmatpush1.xpose.msra.mxu0 0.0
      %2052 = vmatprep.subr.mxu0 0.0
      %2053 = vmatpush1.xpose.msra.mxu0 0.0
      %2054 = vmatprep.subr.mxu0 0.0
      %2055 = vmatpush1.xpose.msra.mxu0 0.0
      %2056 = vmatprep.subr.mxu0 0.0
      %2057 = vmatpush1.xpose.msra.mxu0 0.0
      %2058 = vmatprep.subr.mxu0 0.0
      %2059 = vmatpush1.xpose.msra.mxu0 %v2040
      %2060 = vmatprep.subr.mxu0 0.0
      %2061 = vmatpush1.xpose.msra.mxu0 %v2038
      %2062 = vmatprep.subr.mxu0 0.0
      %2063 = vmatpush1.xpose.msra.mxu0 %v2036
      %2064 = vmatprep.subr.mxu0 0.0
      %2065 = vmatpush1.xpose.msra.mxu0 %v2034
      %2066 = vmatprep.subr.mxu0 0.0
      %2067 = vmatpush1.xpose.msra.mxu0 %v2032
      %2068 = vmatprep.subr.mxu0 0.0
      %2069 = vmatpush1.xpose.msra.mxu0 %v2030
      %2070 = vmatprep.subr.mxu0 0.0
      %2071 = vmatpush1.xpose.msra.mxu0 %v2028
      %2072 = vmatprep.subr.mxu0 0.0
      %2073 = vmatpush1.xpose.msra.mxu0 %v2026
      %2074 = vmatprep.subr.mxu0 0.0
      %2075 = vmatpush2.xpose.msra.mxu0 0.0
      %2076 = vmatprep.subr.mxu0 0.0
      %2077 = vmatpush2.xpose.msra.mxu0 0.0
      %2078 = vmatprep.subr.mxu0 0.0
      %2079 = vmatpush2.xpose.msra.mxu0 0.0
      %2080 = vmatprep.subr.mxu0 0.0
      %2081 = vmatpush2.xpose.msra.mxu0 0.0
      %2082 = vmatprep.subr.mxu0 0.0
      %2083 = vmatpush2.xpose.msra.mxu0 0.0
      %2084 = vmatprep.subr.mxu0 0.0
      %2085 = vmatpush2.xpose.msra.mxu0 0.0
      %2086 = vmatprep.subr.mxu0 0.0
      %2087 = vmatpush2.xpose.msra.mxu0 0.0
      %2088 = vmatprep.subr.mxu0 0.0
      %2089 = vmatpush2.xpose.msra.mxu0 0.0
      %2090 = vmatprep.subr.mxu0 0.0
      %2091 = vmatpush2.xpose.msra.mxu0 0.0
      %2092 = vmatprep.subr.mxu0 0.0
      %2093 = vmatpush2.xpose.msra.mxu0 0.0
      %2094 = vmatprep.subr.mxu0 0.0
      %2095 = vmatpush2.xpose.msra.mxu0 0.0
      %2096 = vmatprep.subr.mxu0 0.0
      %2097 = vmatpush2.xpose.msra.mxu0 0.0
      %2098 = vmatprep.subr.mxu0 0.0
      %2099 = vmatpush2.xpose.msra.mxu0 0.0
      %2100 = vmatprep.subr.mxu0 0.0
      %2101 = vmatpush2.xpose.msra.mxu0 0.0
      %2102 = vmatprep.subr.mxu0 0.0
      %2103 = vmatpush2.xpose.msra.mxu0 0.0
      %2104 = vmatprep.subr.mxu0 0.0
      %2105 = vmatpush2.xpose.msra.mxu0 0.0
      %2106 = vmatprep.mubr.f32.mxu0 0.0
      %2107 = vmatmul.mubr.f32.gmra.mxu0 %v2010
      %v2108 = vpop.f32.mrf.mxu0
      %v2109 = vadd.f32 0.0, %v2108
      %v2110 = vpop.f32.mrf.mxu0
      %2111 = vmatprep.mubr.f32.mxu0 0.0
      %2112 = vmatmul.mubr.f32.gmra.mxu0 %v2012
      %v2113 = vpop.f32.mrf.mxu0
      %v2114 = vadd.f32 0.0, %v2113
      %v2115 = vpop.f32.mrf.mxu0
      %2116 = vmatprep.mubr.f32.mxu0 0.0
      %2117 = vmatmul.mubr.f32.gmra.mxu0 %v2014
      %v2118 = vpop.f32.mrf.mxu0
      %v2119 = vadd.f32 0.0, %v2118
      %v2120 = vpop.f32.mrf.mxu0
      %2121 = vmatprep.mubr.f32.mxu0 0.0
      %2122 = vmatmul.mubr.f32.gmra.mxu0 %v2016
      %v2123 = vpop.f32.mrf.mxu0
      %v2124 = vadd.f32 0.0, %v2123
      %v2125 = vpop.f32.mrf.mxu0
      %2126 = vmatprep.mubr.f32.mxu0 0.0
      %2127 = vmatmul.mubr.f32.gmra.mxu0 %v2018
      %v2128 = vpop.f32.mrf.mxu0
      %v2129 = vadd.f32 0.0, %v2128
      %v2130 = vpop.f32.mrf.mxu0
      %2131 = vmatprep.mubr.f32.mxu0 0.0
      %2132 = vmatmul.mubr.f32.gmra.mxu0 %v2020
      %v2133 = vpop.f32.mrf.mxu0
      %v2134 = vadd.f32 0.0, %v2133
      %v2135 = vpop.f32.mrf.mxu0
      %2136 = vmatprep.mubr.f32.mxu0 0.0
      %2137 = vmatmul.mubr.f32.gmra.mxu0 %v2022
      %v2138 = vpop.f32.mrf.mxu0
      %v2139 = vadd.f32 0.0, %v2138
      %v2140 = vpop.f32.mrf.mxu0
      %2141 = vmatprep.mubr.f32.mxu0 0.0
      %2142 = vmatmul.mubr.f32.gmra.mxu0 %v2024
      %v2143 = vpop.f32.mrf.mxu0
      %v2144 = vadd.f32 0.0, %v2143
      %v2145 = vpop.f32.mrf.mxu0
      %2146 = vdwg.mxu0
      %v2147 = vsel %vm518, %v2109, -inf
      %2148 = vmax.xlane.f32.xlu0 %v2147
      %v2149 = vpop.xlane.xlu0 %2148
      %v2150 = vsel %vm518, %v2114, -inf
      %2151 = vmax.xlane.f32.xlu0 %v2150
      %v2152 = vpop.xlane.xlu0 %2151
      %v2153 = vsel %vm518, %v2119, -inf
      %2154 = vmax.xlane.f32.xlu0 %v2153
      %v2155 = vpop.xlane.xlu0 %2154
      %v2156 = vsel %vm518, %v2124, -inf
      %2157 = vmax.xlane.f32.xlu0 %v2156
      %v2158 = vpop.xlane.xlu0 %2157
      %v2159 = vsel %vm518, %v2129, -inf
      %2160 = vmax.xlane.f32.xlu0 %v2159
      %v2161 = vpop.xlane.xlu0 %2160
      %v2162 = vsel %vm518, %v2134, -inf
      %2163 = vmax.xlane.f32.xlu0 %v2162
      %v2164 = vpop.xlane.xlu0 %2163
      %v2165 = vsel %vm518, %v2139, -inf
      %2166 = vmax.xlane.f32.xlu0 %v2165
      %v2167 = vpop.xlane.xlu0 %2166
      %v2168 = vsel %vm518, %v2144, -inf
      %2169 = vmax.xlane.f32.xlu0 %v2168
      %v2170 = vpop.xlane.xlu0 %2169
      %v2171 = vsub.f32 %v2109, %v2149
      %v2172 = vsub.f32 %v2114, %v2152
      %v2173 = vsub.f32 %v2119, %v2155
      %v2174 = vsub.f32 %v2124, %v2158
      %v2175 = vsub.f32 %v2129, %v2161
      %v2176 = vsub.f32 %v2134, %v2164
      %v2177 = vsub.f32 %v2139, %v2167
      %v2178 = vsub.f32 %v2144, %v2170
      %v2179 = vmul.f32 %v2171, 1.442695
      %v2180 = vpow.pop %v2179
      %v2181 = vmul.f32 %v2172, 1.442695
      %v2182 = vpow.pop %v2181
      %v2183 = vmul.f32 %v2173, 1.442695
      %v2184 = vpow.pop %v2183
      %v2185 = vmul.f32 %v2174, 1.442695
      %v2186 = vpow.pop %v2185
      %v2187 = vmul.f32 %v2175, 1.442695
      %v2188 = vpow.pop %v2187
      %v2189 = vmul.f32 %v2176, 1.442695
      %v2190 = vpow.pop %v2189
      %v2191 = vmul.f32 %v2177, 1.442695
      %v2192 = vpow.pop %v2191
      %v2193 = vmul.f32 %v2178, 1.442695
      %v2194 = vpow.pop %v2193
      %v2195 = vsel %vm518, %v2180, 0.0
      %2196 = vadd.xlane.f32.xlu0 %v2195
      %v2197 = vpop.xlane.xlu0 %2196
      %v2198 = vsel %vm518, %v2182, 0.0
      %2199 = vadd.xlane.f32.xlu0 %v2198
      %v2200 = vpop.xlane.xlu0 %2199
      %v2201 = vsel %vm518, %v2184, 0.0
      %2202 = vadd.xlane.f32.xlu0 %v2201
      %v2203 = vpop.xlane.xlu0 %2202
      %v2204 = vsel %vm518, %v2186, 0.0
      %2205 = vadd.xlane.f32.xlu0 %v2204
      %v2206 = vpop.xlane.xlu0 %2205
      %v2207 = vsel %vm518, %v2188, 0.0
      %2208 = vadd.xlane.f32.xlu0 %v2207
      %v2209 = vpop.xlane.xlu0 %2208
      %v2210 = vsel %vm518, %v2190, 0.0
      %2211 = vadd.xlane.f32.xlu0 %v2210
      %v2212 = vpop.xlane.xlu0 %2211
      %v2213 = vsel %vm518, %v2192, 0.0
      %2214 = vadd.xlane.f32.xlu0 %v2213
      %v2215 = vpop.xlane.xlu0 %2214
      %v2216 = vsel %vm518, %v2194, 0.0
      %2217 = vadd.xlane.f32.xlu0 %v2216
      %v2218 = vpop.xlane.xlu0 %2217
      %v2219 = vrcp.pop %v2197
      %v2220 = vrcp.pop %v2200
      %v2221 = vrcp.pop %v2203
      %v2222 = vrcp.pop %v2206
      %v2223 = vrcp.pop %v2209
      %v2224 = vrcp.pop %v2212
      %v2225 = vrcp.pop %v2215
      %v2226 = vrcp.pop %v2218
      %v2227 = vmul.f32 %v2180, %v2219
      %v2228 = vmul.f32 %v2182, %v2220
      %v2229 = vmul.f32 %v2184, %v2221
      %v2230 = vmul.f32 %v2186, %v2222
      %v2231 = vmul.f32 %v2188, %v2223
      %v2232 = vmul.f32 %v2190, %v2224
      %v2233 = vmul.f32 %v2192, %v2225
      %v2234 = vmul.f32 %v2194, %v2226
      %2235 = vrot.lane.b32.xlu0 %v302, 40
      %v2236 = vpop.permute.xlu0 %2235
      %2237 = vrot.lane.b32.xlu0 %v307, 40
      %v2238 = vpop.permute.xlu0 %2237
      %2239 = vrot.lane.b32.xlu0 %v312, 40
      %v2240 = vpop.permute.xlu0 %2239
      %2241 = vrot.lane.b32.xlu0 %v317, 40
      %v2242 = vpop.permute.xlu0 %2241
      %2243 = vrot.lane.b32.xlu0 %v322, 40
      %v2244 = vpop.permute.xlu0 %2243
      %2245 = vrot.lane.b32.xlu0 %v327, 40
      %v2246 = vpop.permute.xlu0 %2245
      %2247 = vrot.lane.b32.xlu0 %v332, 40
      %v2248 = vpop.permute.xlu0 %2247
      %2249 = vrot.lane.b32.xlu0 %v337, 40
      %v2250 = vpop.permute.xlu0 %2249
      %v2260 = vsel %vm518, %v2227, 0
      %v2263 = vsel %vm518, %v2228, 0
      %v2266 = vsel %vm518, %v2229, 0
      %v2269 = vsel %vm518, %v2230, 0
      %v2272 = vsel %vm518, %v2231, 0
      %v2275 = vsel %vm518, %v2232, 0
      %v2278 = vsel %vm518, %v2233, 0
      %v2281 = vsel %vm518, %v2234, 0
      %2283 = vmatprep.subr.mxu0 0.0
      %2284 = vmatpush1.msra.mxu0 0.0
      %2285 = vmatprep.subr.mxu0 0.0
      %2286 = vmatpush1.msra.mxu0 0.0
      %2287 = vmatprep.subr.mxu0 0.0
      %2288 = vmatpush1.msra.mxu0 0.0
      %2289 = vmatprep.subr.mxu0 0.0
      %2290 = vmatpush1.msra.mxu0 0.0
      %2291 = vmatprep.subr.mxu0 0.0
      %2292 = vmatpush1.msra.mxu0 0.0
      %2293 = vmatprep.subr.mxu0 0.0
      %2294 = vmatpush1.msra.mxu0 0.0
      %2295 = vmatprep.subr.mxu0 0.0
      %2296 = vmatpush1.msra.mxu0 0.0
      %2297 = vmatprep.subr.mxu0 0.0
      %2298 = vmatpush1.msra.mxu0 0.0
      %2299 = vmatprep.subr.mxu0 0.0
      %2300 = vmatpush1.msra.mxu0 %v2250
      %2301 = vmatprep.subr.mxu0 0.0
      %2302 = vmatpush1.msra.mxu0 %v2248
      %2303 = vmatprep.subr.mxu0 0.0
      %2304 = vmatpush1.msra.mxu0 %v2246
      %2305 = vmatprep.subr.mxu0 0.0
      %2306 = vmatpush1.msra.mxu0 %v2244
      %2307 = vmatprep.subr.mxu0 0.0
      %2308 = vmatpush1.msra.mxu0 %v2242
      %2309 = vmatprep.subr.mxu0 0.0
      %2310 = vmatpush1.msra.mxu0 %v2240
      %2311 = vmatprep.subr.mxu0 0.0
      %2312 = vmatpush1.msra.mxu0 %v2238
      %2313 = vmatprep.subr.mxu0 0.0
      %2314 = vmatpush1.msra.mxu0 %v2236
      %2315 = vmatprep.subr.mxu0 0.0
      %2316 = vmatpush2.msra.mxu0 0.0
      %2317 = vmatprep.subr.mxu0 0.0
      %2318 = vmatpush2.msra.mxu0 0.0
      %2319 = vmatprep.subr.mxu0 0.0
      %2320 = vmatpush2.msra.mxu0 0.0
      %2321 = vmatprep.subr.mxu0 0.0
      %2322 = vmatpush2.msra.mxu0 0.0
      %2323 = vmatprep.subr.mxu0 0.0
      %2324 = vmatpush2.msra.mxu0 0.0
      %2325 = vmatprep.subr.mxu0 0.0
      %2326 = vmatpush2.msra.mxu0 0.0
      %2327 = vmatprep.subr.mxu0 0.0
      %2328 = vmatpush2.msra.mxu0 0.0
      %2329 = vmatprep.subr.mxu0 0.0
      %2330 = vmatpush2.msra.mxu0 0.0
      %2331 = vmatprep.subr.mxu0 0.0
      %2332 = vmatpush2.msra.mxu0 0.0
      %2333 = vmatprep.subr.mxu0 0.0
      %2334 = vmatpush2.msra.mxu0 0.0
      %2335 = vmatprep.subr.mxu0 0.0
      %2336 = vmatpush2.msra.mxu0 0.0
      %2337 = vmatprep.subr.mxu0 0.0
      %2338 = vmatpush2.msra.mxu0 0.0
      %2339 = vmatprep.subr.mxu0 0.0
      %2340 = vmatpush2.msra.mxu0 0.0
      %2341 = vmatprep.subr.mxu0 0.0
      %2342 = vmatpush2.msra.mxu0 0.0
      %2343 = vmatprep.subr.mxu0 0.0
      %2344 = vmatpush2.msra.mxu0 0.0
      %2345 = vmatprep.subr.mxu0 0.0
      %2346 = vmatpush2.msra.mxu0 0.0
      %2347 = vmatprep.mubr.f32.mxu0 0.0
      %2348 = vmatmul.mubr.f32.gmra.mxu0 %v2260
      %v2349 = vpop.f32.mrf.mxu0
      %v2350 = vadd.f32 0.0, %v2349
      %v2351 = vpop.f32.mrf.mxu0
      %2352 = vmatprep.mubr.f32.mxu0 0.0
      %2353 = vmatmul.mubr.f32.gmra.mxu0 %v2263
      %v2354 = vpop.f32.mrf.mxu0
      %v2355 = vadd.f32 0.0, %v2354
      %v2356 = vpop.f32.mrf.mxu0
      %2357 = vmatprep.mubr.f32.mxu0 0.0
      %2358 = vmatmul.mubr.f32.gmra.mxu0 %v2266
      %v2359 = vpop.f32.mrf.mxu0
      %v2360 = vadd.f32 0.0, %v2359
      %v2361 = vpop.f32.mrf.mxu0
      %2362 = vmatprep.mubr.f32.mxu0 0.0
      %2363 = vmatmul.mubr.f32.gmra.mxu0 %v2269
      %v2364 = vpop.f32.mrf.mxu0
      %v2365 = vadd.f32 0.0, %v2364
      %v2366 = vpop.f32.mrf.mxu0
      %2367 = vmatprep.mubr.f32.mxu0 0.0
      %2368 = vmatmul.mubr.f32.gmra.mxu0 %v2272
      %v2369 = vpop.f32.mrf.mxu0
      %v2370 = vadd.f32 0.0, %v2369
      %v2371 = vpop.f32.mrf.mxu0
      %2372 = vmatprep.mubr.f32.mxu0 0.0
      %2373 = vmatmul.mubr.f32.gmra.mxu0 %v2275
      %v2374 = vpop.f32.mrf.mxu0
      %v2375 = vadd.f32 0.0, %v2374
      %v2376 = vpop.f32.mrf.mxu0
      %2377 = vmatprep.mubr.f32.mxu0 0.0
      %2378 = vmatmul.mubr.f32.gmra.mxu0 %v2278
      %v2379 = vpop.f32.mrf.mxu0
      %v2380 = vadd.f32 0.0, %v2379
      %v2381 = vpop.f32.mrf.mxu0
      %2382 = vmatprep.mubr.f32.mxu0 0.0
      %2383 = vmatmul.mubr.f32.gmra.mxu0 %v2281
      %v2384 = vpop.f32.mrf.mxu0
      %v2385 = vadd.f32 0.0, %v2384
      %v2386 = vpop.f32.mrf.mxu0
      %2387 = vdwg.mxu0
      %v2388 = vld [vmem:[%s2 + $0x18] sm:$0xff]
      %v2390 = vsel %vm372, %v2350, 0
      %v2393 = vsel %vm372, %v2355, 0
      %v2396 = vsel %vm372, %v2360, 0
      %v2399 = vsel %vm372, %v2365, 0
      %v2402 = vsel %vm372, %v2370, 0
      %v2405 = vsel %vm372, %v2375, 0
      %v2408 = vsel %vm372, %v2380, 0
      %v2411 = vsel %vm372, %v2385, 0
      %2413 = vmatprep.subr.mxu0 0.0
      %2414 = vmatpush1.msra.mxu0 0.0
      %2415 = vmatprep.subr.mxu0 0.0
      %2416 = vmatpush1.msra.mxu0 0.0
      %2417 = vmatprep.subr.mxu0 0.0
      %2418 = vmatpush1.msra.mxu0 0.0
      %2419 = vmatprep.subr.mxu0 0.0
      %2420 = vmatpush1.msra.mxu0 0.0
      %2421 = vmatprep.subr.mxu0 0.0
      %2422 = vmatpush1.msra.mxu0 0.0
      %2423 = vmatprep.subr.mxu0 0.0
      %2424 = vmatpush1.msra.mxu0 0.0
      %2425 = vmatprep.subr.mxu0 0.0
      %2426 = vmatpush1.msra.mxu0 0.0
      %2427 = vmatprep.subr.mxu0 0.0
      %2428 = vmatpush1.msra.mxu0 0.0
      %2429 = vmatprep.subr.mxu0 0.0
      %2430 = vmatpush1.msra.mxu0 0.0
      %2431 = vmatprep.subr.mxu0 0.0
      %2432 = vmatpush1.msra.mxu0 0.0
      %2433 = vmatprep.subr.mxu0 0.0
      %2434 = vmatpush1.msra.mxu0 0.0
      %2435 = vmatprep.subr.mxu0 0.0
      %2436 = vmatpush1.msra.mxu0 0.0
      %2437 = vmatprep.subr.mxu0 0.0
      %2438 = vmatpush1.msra.mxu0 0.0
      %2439 = vmatprep.subr.mxu0 0.0
      %2440 = vmatpush1.msra.mxu0 0.0
      %2441 = vmatprep.subr.mxu0 0.0
      %2442 = vmatpush1.msra.mxu0 0.0
      %2443 = vmatprep.subr.mxu0 0.0
      %2444 = vmatpush1.msra.mxu0 %v2388
      %2445 = vmatprep.subr.mxu0 0.0
      %2446 = vmatpush2.msra.mxu0 0.0
      %2447 = vmatprep.subr.mxu0 0.0
      %2448 = vmatpush2.msra.mxu0 0.0
      %2449 = vmatprep.subr.mxu0 0.0
      %2450 = vmatpush2.msra.mxu0 0.0
      %2451 = vmatprep.subr.mxu0 0.0
      %2452 = vmatpush2.msra.mxu0 0.0
      %2453 = vmatprep.subr.mxu0 0.0
      %2454 = vmatpush2.msra.mxu0 0.0
      %2455 = vmatprep.subr.mxu0 0.0
      %2456 = vmatpush2.msra.mxu0 0.0
      %2457 = vmatprep.subr.mxu0 0.0
      %2458 = vmatpush2.msra.mxu0 0.0
      %2459 = vmatprep.subr.mxu0 0.0
      %2460 = vmatpush2.msra.mxu0 0.0
      %2461 = vmatprep.subr.mxu0 0.0
      %2462 = vmatpush2.msra.mxu0 0.0
      %2463 = vmatprep.subr.mxu0 0.0
      %2464 = vmatpush2.msra.mxu0 0.0
      %2465 = vmatprep.subr.mxu0 0.0
      %2466 = vmatpush2.msra.mxu0 0.0
      %2467 = vmatprep.subr.mxu0 0.0
      %2468 = vmatpush2.msra.mxu0 0.0
      %2469 = vmatprep.subr.mxu0 0.0
      %2470 = vmatpush2.msra.mxu0 0.0
      %2471 = vmatprep.subr.mxu0 0.0
      %2472 = vmatpush2.msra.mxu0 0.0
      %2473 = vmatprep.subr.mxu0 0.0
      %2474 = vmatpush2.msra.mxu0 0.0
      %2475 = vmatprep.subr.mxu0 0.0
      %2476 = vmatpush2.msra.mxu0 0.0
      %2477 = vmatprep.mubr.f32.mxu0 0.0
      %2478 = vmatmul.mubr.f32.gmra.mxu0 %v2390
      %v2479 = vpop.f32.mrf.mxu0
      %v2480 = vadd.f32 0.0, %v2479
      %v2481 = vpop.f32.mrf.mxu0
      %2482 = vmatprep.mubr.f32.mxu0 0.0
      %2483 = vmatmul.mubr.f32.gmra.mxu0 %v2393
      %v2484 = vpop.f32.mrf.mxu0
      %v2485 = vadd.f32 0.0, %v2484
      %v2486 = vpop.f32.mrf.mxu0
      %2487 = vmatprep.mubr.f32.mxu0 0.0
      %2488 = vmatmul.mubr.f32.gmra.mxu0 %v2396
      %v2489 = vpop.f32.mrf.mxu0
      %v2490 = vadd.f32 0.0, %v2489
      %v2491 = vpop.f32.mrf.mxu0
      %2492 = vmatprep.mubr.f32.mxu0 0.0
      %2493 = vmatmul.mubr.f32.gmra.mxu0 %v2399
      %v2494 = vpop.f32.mrf.mxu0
      %v2495 = vadd.f32 0.0, %v2494
      %v2496 = vpop.f32.mrf.mxu0
      %2497 = vmatprep.mubr.f32.mxu0 0.0
      %2498 = vmatmul.mubr.f32.gmra.mxu0 %v2402
      %v2499 = vpop.f32.mrf.mxu0
      %v2500 = vadd.f32 0.0, %v2499
      %v2501 = vpop.f32.mrf.mxu0
      %2502 = vmatprep.mubr.f32.mxu0 0.0
      %2503 = vmatmul.mubr.f32.gmra.mxu0 %v2405
      %v2504 = vpop.f32.mrf.mxu0
      %v2505 = vadd.f32 0.0, %v2504
      %v2506 = vpop.f32.mrf.mxu0
      %2507 = vmatprep.mubr.f32.mxu0 0.0
      %2508 = vmatmul.mubr.f32.gmra.mxu0 %v2408
      %v2509 = vpop.f32.mrf.mxu0
      %v2510 = vadd.f32 0.0, %v2509
      %v2511 = vpop.f32.mrf.mxu0
      %2512 = vmatprep.mubr.f32.mxu0 0.0
      %2513 = vmatmul.mubr.f32.gmra.mxu0 %v2411
      %v2514 = vpop.f32.mrf.mxu0
      %v2515 = vadd.f32 0.0, %v2514
      %v2516 = vpop.f32.mrf.mxu0
      %2517 = vdwg.mxu0
      %v2518 = vadd.f32 %v1970, %v2480
      %v2519 = vadd.f32 %v1971, %v2485
      %v2520 = vadd.f32 %v1972, %v2490
      %v2521 = vadd.f32 %v1973, %v2495
      %v2522 = vadd.f32 %v1974, %v2500
      %v2523 = vadd.f32 %v1975, %v2505
      %v2524 = vadd.f32 %v1976, %v2510
      %v2525 = vadd.f32 %v1977, %v2515
      %v2526 = vld [vmem:[%s3] sm:$0x1]
      %v2528 = vlaneseq
      %v2529 = vshrl.u32 %v2528, 7
      %v2530 = vsub.s32 0, %v2529
      %v2531 = vrot.slane %v2526, %v2530
      %v2533 = vadd.f32 %v2518, %v2531
      %v2534 = vadd.f32 %v2519, %v2531
      %v2535 = vadd.f32 %v2520, %v2531
      %v2536 = vadd.f32 %v2521, %v2531
      %v2537 = vadd.f32 %v2522, %v2531
      %v2538 = vadd.f32 %v2523, %v2531
      %v2539 = vadd.f32 %v2524, %v2531
      %v2540 = vadd.f32 %v2525, %v2531
      %2541 = vst.msk [vmem:[%s197] sm:$0xff] %vm210, %v2533
      %2542 = vst.msk [vmem:[%s197 + $0x8] sm:$0xff] %vm210, %v2534
      %2543 = vst.msk [vmem:[%s197 + $0x10] sm:$0xff] %vm210, %v2535
      %2544 = vst.msk [vmem:[%s197 + $0x18] sm:$0xff] %vm210, %v2536
      %2545 = vst.msk [vmem:[%s197 + $0x20] sm:$0xff] %vm210, %v2537
      %2546 = vst.msk [vmem:[%s197 + $0x28] sm:$0xff] %vm210, %v2538
      %2547 = vst.msk [vmem:[%s197 + $0x30] sm:$0xff] %vm210, %v2539
      %2548 = vst.msk [vmem:[%s197 + $0x38] sm:$0xff] %vm210, %v2540
      %p2549 = scmp.lt.s32.totalorder %s15, 1
      %s2550 = scalar_select %p2549, %s15, 1
      %s2551 = smul.addr %s2550, 8
      %s2552 = smul.addr %s2551, 8
      %s2553 = scalar_lea.vmem %s4, %s2552
      // Predicated region
      $region37: #{tpu_custom_call.1} parent=35 // pred_check
        %p2554 = pneg %p122
      $region38: #{tpu_custom_call.1} parent=35 // pred_check_branch
        %2556 = sbr.rel (%p2554) target = $region40
      $region39: #{tpu_custom_call.1} parent=35 // pred_region
        _
      $region40: #{tpu_custom_call.1} parent=35 // pred_fallthru
        _
    $region36: #{tpu_custom_call.1} parent=5 // pred_fallthru
      _
    %p2557 = scmp.le.s32.totalorder 2, %s10
    // Predicated region
    $region41: #{tpu_custom_call.1} parent=5 // pred_check
      %p2558 = pneg %p2557
    $region42: #{tpu_custom_call.1} parent=5 // pred_check_branch
      %2560 = sbr.rel (%p2558) target = $region44
    $region43: #{tpu_custom_call.1} parent=5 // pred_region
      %s2561 = ssub.s32 %s10, 2
      // Predicated region
      $region45: #{tpu_custom_call.1} parent=43 // pred_check
        %p2562 = pneg %p128
      $region46: #{tpu_custom_call.1} parent=43 // pred_check_branch
        %2564 = sbr.rel (%p2562) target = $region48
      $region47: #{tpu_custom_call.1} parent=43 // pred_region
        %p2565 = scmp.lt.s32.totalorder %s16, 1
        %s2566 = scalar_select %p2565, %s16, 1
        %s2567 = smul.addr %s2566, 8
        %s2568 = smul.addr %s2567, 8
        %s2569 = scalar_lea.vmem %s4, %s2568
      $region48: #{tpu_custom_call.1} parent=43 // pred_fallthru
        _
    $region44: #{tpu_custom_call.1} parent=5 // pred_fallthru
      _
  $region6: #{tpu_custom_call.1} parent=0 // loop_footer
    %s14 = sadd.s32 1, %s10
  $region7: #{tpu_custom_call.1} parent=0 // loop_footer_branch
    %9 = sbr.rel target = $region3
  $region8: #{tpu_custom_call.1} parent=0 // loop_exit
    _

</llo_original>
